<compile_context>
chip_gen: v7x
topology: tpu7x:2x2x1
jax: 0.10.0
libtpu: 0.0.40
codegen_flags: <defaults>
</compile_context>

<pallas_src>
import functools

import jax
import jax.numpy as jnp
import numpy as np
from jax.experimental import pallas as pl
from jax.experimental.pallas import tpu as pltpu

_LANE = 128
_INV_SQRT2 = 0.7071067811865476
_VMEM_CAP = None


# ----------------------------------------------------------------------------- helpers
def _round_up(x, m):
    return (x + m - 1) // m * m


def _vmem_cap():
    """Generation-aware ceiling for vmem_limit_bytes (3/4 of physical VMEM)."""
    global _VMEM_CAP
    if _VMEM_CAP is None:
        cap = 40 << 20                      # safe fallback on every generation
        try:
            info = pltpu.get_tpu_info()
            phys = getattr(info, "vmem_capacity_bytes", None)
            if phys:
                cap = int(phys) * 3 // 4
        except Exception:
            pass
        _VMEM_CAP = cap
    return _VMEM_CAP


def _mosaic_params(dims, vmem_bytes=None):
    # Only raise the scoped-VMEM limit when the estimate actually needs more than the
    # 32 MiB default; never lower it (robustness fix from the review).
    kwargs = dict(dimension_semantics=dims)
    if vmem_bytes is not None and vmem_bytes > (32 << 20):
        kwargs["vmem_limit_bytes"] = int(min(vmem_bytes, _vmem_cap()))
    return pltpu.CompilerParams(**kwargs)


def _pick_band(H, block_h, min_rows):
    """Largest divisor of H that is <= block_h; fall back to a single band (never 1-row bands)."""
    th = min(block_h, H)
    while th > 1 and H % th != 0:
        th -= 1
    if th < min_rows or H % th != 0:
        th = H
    return th


def _gelu_exact(x):
    # matches torch.nn.GELU default (erf form)
    return 0.5 * x * (1.0 + jax.lax.erf(x * _INV_SQRT2))


def _silu(x):
    return x * jax.nn.sigmoid(x)


# ----------------------------------------------------------------------------- linear kernel (fused LN/SiLU/GELU/residual)
def _linear_kernel(*refs, pre, activation, has_res):
    i = 0
    x_ref = refs[i]; i += 1
    if pre == "ln":
        g_ref, bb_ref = refs[i], refs[i + 1]; i += 2
    w_ref, b_ref = refs[i], refs[i + 1]; i += 2
    r_ref = None
    if has_res:
        r_ref = refs[i]; i += 1
    o_ref = refs[i]

    x = x_ref[...].astype(jnp.float32)
    if pre == "silu":
        x = _silu(x)
    elif pre == "ln":
        mu = jnp.mean(x, axis=-1, keepdims=True)
        xc = x - mu
        var = jnp.mean(xc * xc, axis=-1, keepdims=True)
        x = xc * jax.lax.rsqrt(var + 1e-5)
        x = x * g_ref[...].astype(jnp.float32) + bb_ref[...].astype(jnp.float32)

    y = jnp.dot(x.astype(jnp.bfloat16), w_ref[...].astype(jnp.bfloat16),
                preferred_element_type=jnp.float32)
    y = y + b_ref[...].astype(jnp.float32)
    if activation == "gelu":
        y = _gelu_exact(y)
    if has_res:
        y = y + r_ref[...].astype(jnp.float32)
    o_ref[...] = y.astype(o_ref.dtype)


def linear_pallas(x2d, w, b, *, pre=None, ln_params=None, activation=None, residual=None):
    m, k = x2d.shape
    n = w.shape[1]
    tm = min(512, _round_up(m, 8))                 # big tiles, ragged last block handled by Pallas
    grid = (pl.cdiv(m, tm),)

    in_specs = [pl.BlockSpec((tm, k), lambda i: (i, 0))]
    args = [x2d]
    if pre == "ln":
        g, bb = ln_params
        in_specs += [pl.BlockSpec((1, k), lambda i: (0, 0)),
                     pl.BlockSpec((1, k), lambda i: (0, 0))]
        args += [g.reshape(1, k), bb.reshape(1, k)]
    in_specs += [pl.BlockSpec((k, n), lambda i: (0, 0)),
                 pl.BlockSpec((1, n), lambda i: (0, 0))]
    args += [w, b.reshape(1, n)]
    if residual is not None:
        in_specs.append(pl.BlockSpec((tm, n), lambda i: (i, 0)))
        args.append(residual)

    itemsize = jnp.dtype(x2d.dtype).itemsize
    vmem = itemsize * (2 * (tm * k + k * n + n + tm * n) + (2 * tm * n if residual is not None else 0)) + (1 << 20)

    out = pl.pallas_call(
        functools.partial(_linear_kernel, pre=pre, activation=activation,
                          has_res=residual is not None),
        out_shape=jax.ShapeDtypeStruct((m, n), x2d.dtype),
        grid_spec=pltpu.PrefetchScalarGridSpec(
            num_scalar_prefetch=0, grid=grid,
            in_specs=in_specs,
            out_specs=pl.BlockSpec((tm, n), lambda i: (i, 0)),
        ),
        compiler_params=_mosaic_params(("parallel",), vmem),
    )(*args)
    return out


# ----------------------------------------------------------------------------- window attention kernel
def _window_attn_kernel(qkv_ref, rpb_ref, mask_ref, pw_ref, pb_ref, o_ref, *,
                        heads, ws, nww, scale):
    n = ws * ws
    c3 = qkv_ref.shape[-1]
    C = c3 // 3
    hd = C // heads

    qkv = qkv_ref[0].astype(jnp.float32)                              # (ws, nww*ws, 3C)
    # window partition inside the kernel (windows along the W axis of this row of windows)
    qkv = qkv.reshape(ws, nww, ws, c3).transpose(1, 0, 2, 3).reshape(nww, n, c3)
    q_all = qkv[:, :, :C]
    k_all = qkv[:, :, C:2 * C]
    v_all = qkv[:, :, 2 * C:]

    rpb_all = rpb_ref[...].astype(jnp.float32)                        # (heads, n, n)
    mask_v = mask_ref[...].astype(jnp.float32)                        # (nww, n, n)

    outs = []
    for h in range(heads):                                            # static loop over heads
        qh = q_all[:, :, h * hd:(h + 1) * hd]
        kh = k_all[:, :, h * hd:(h + 1) * hd]
        vh = v_all[:, :, h * hd:(h + 1) * hd]
        s = jnp.einsum("wqd,wkd->wqk", qh.astype(jnp.bfloat16), kh.astype(jnp.bfloat16),
                       preferred_element_type=jnp.float32) * scale
        s = s + rpb_all[h][None] + mask_v
        s = s - jnp.max(s, axis=-1, keepdims=True)
        p = jnp.exp(s)
        p = p * pl.reciprocal(jnp.sum(p, axis=-1, keepdims=True), approx=True)
        outs.append(jnp.einsum("wqk,wkd->wqd", p.astype(jnp.bfloat16), vh.astype(jnp.bfloat16),
                               preferred_element_type=jnp.float32))
    o = jnp.concatenate(outs, axis=-1)                                # (nww, n, C), heads merged

    # fused output projection (lane-dense (nww*n, C) matmul)
    o = o.reshape(nww * n, C)
    o = jnp.dot(o.astype(jnp.bfloat16), pw_ref[...].astype(jnp.bfloat16),
                preferred_element_type=jnp.float32) + pb_ref[...].astype(jnp.float32)

    # window reverse back to the spatial row-of-windows layout
    o = o.reshape(nww, ws, ws, C).transpose(1, 0, 2, 3).reshape(ws, nww * ws, C)
    o_ref[0] = o.astype(o_ref.dtype)


def window_attention_pallas(qkv_bhwc, rpb, mask, proj_w, proj_b, heads, ws, scale):
    B, H, W, c3 = qkv_bhwc.shape
    C = c3 // 3
    n = ws * ws
    nwh, nww = H // ws, W // ws
    return pl.pallas_call(
        functools.partial(_window_attn_kernel, heads=heads, ws=ws, nww=nww, scale=scale),
        out_shape=jax.ShapeDtypeStruct((B, H, W, C), qkv_bhwc.dtype),
        grid_spec=pltpu.PrefetchScalarGridSpec(
            num_scalar_prefetch=0,
            grid=(B, nwh),
            in_specs=[
                pl.BlockSpec((1, ws, W, c3), lambda b, i: (b, i, 0, 0)),   # window row, no XLA relayout
                pl.BlockSpec((heads, n, n), lambda b, i: (0, 0, 0)),       # rel-pos bias (not broadcast in HBM)
                pl.BlockSpec((nww, n, n), lambda b, i: (i, 0, 0)),         # shift mask (zeros if no shift)
                pl.BlockSpec((C, C), lambda b, i: (0, 0)),
                pl.BlockSpec((1, C), lambda b, i: (0, 0)),
            ],
            out_specs=pl.BlockSpec((1, ws, W, C), lambda b, i: (b, i, 0, 0)),
        ),
        compiler_params=_mosaic_params(("parallel", "parallel")),
    )(qkv_bhwc, rpb, mask, proj_w, proj_b.reshape(1, C))


# ----------------------------------------------------------------------------- 3x3 conv kernel (im2col + fused GN/SiLU/residual)
def _conv3x3_kernel(*refs, H, W, K, TH, nh, pre_silu, has_aff, has_res):
    i = 0
    x_hbm = refs[i]; i += 1
    sc_ref = sh_ref = r_ref = None
    if has_aff:
        sc_ref, sh_ref = refs[i], refs[i + 1]; i += 2
    w_ref, b_ref = refs[i], refs[i + 1]; i += 2
    if has_res:
        r_ref = refs[i]; i += 1
    o_ref, xs, sem = refs[i], refs[i + 1], refs[i + 2]

    bi = pl.program_id(0)
    hb = pl.program_id(1)
    pad = (K - 1) // 2
    halo = 2 * pad
    ci = xs.shape[-1]
    co = o_ref.shape[-1]
    lane_w = W + halo

    def _mk(src_row, dst_row, rows):
        return pltpu.make_async_copy(
            x_hbm.at[bi, pl.ds(src_row, rows)],
            xs.at[pl.ds(dst_row, rows), pl.ds(pad, W)],
            sem.at[0])

    # ---- 1) issue the row-band halo DMA (no jnp.pad HBM round trip) ----
    if nh == 1:
        xs[0:pad] = jnp.zeros((pad, lane_w, ci), xs.dtype)
        xs[TH + pad:] = jnp.zeros((pad, lane_w, ci), xs.dtype)
        _mk(0, pad, H).start()
    else:
        @pl.when(hb == 0)
        def _():
            xs[0:pad] = jnp.zeros((pad, lane_w, ci), xs.dtype)
            _mk(0, pad, TH + pad).start()

        @pl.when(hb == nh - 1)
        def _():
            xs[TH + pad:] = jnp.zeros((pad, lane_w, ci), xs.dtype)
            _mk(H - TH - pad, 0, TH + pad).start()

        @pl.when(jnp.logical_and(hb > 0, hb < nh - 1))
        def _():
            _mk(hb * TH - pad, 0, TH + halo).start()

    # ---- 2) overlap: zero the W-halo columns and preload weights while the DMA flies ----
    xs[:, 0:pad, :] = jnp.zeros((TH + halo, pad, ci), xs.dtype)
    xs[:, pad + W:, :] = jnp.zeros((TH + halo, pad, ci), xs.dtype)
    w2d = w_ref[...].astype(jnp.bfloat16)                 # (K*K*ci, co)
    bias = b_ref[...].astype(jnp.float32)                 # (1, co)

    # ---- 3) wait (descriptor shapes must match the branch that issued the copy) ----
    if nh == 1:
        _mk(0, pad, H).wait()
    else:
        @pl.when(hb == 0)
        def _():
            _mk(0, pad, TH + pad).wait()

        @pl.when(hb == nh - 1)
        def _():
            _mk(H - TH - pad, 0, TH + pad).wait()

        @pl.when(jnp.logical_and(hb > 0, hb < nh - 1))
        def _():
            _mk(hb * TH - pad, 0, TH + halo).wait()

    # ---- 4) fused GroupNorm-affine + SiLU on the band (padding forced back to zero) ----
    xv = xs[...].astype(jnp.float32)
    if has_aff:
        xv = xv * sc_ref[0, 0].astype(jnp.float32) + sh_ref[0, 0].astype(jnp.float32)
    if pre_silu:
        xv = _silu(xv)
    if has_aff or pre_silu:
        row = jax.lax.broadcasted_iota(jnp.int32, xv.shape, 0)
        col = jax.lax.broadcasted_iota(jnp.int32, xv.shape, 1)
        row_lo = jnp.where(hb == 0, pad, 0)
        row_hi = jnp.where(hb == nh - 1, TH + pad, TH + halo)
        valid = (row >= row_lo) & (row < row_hi) & (col >= pad) & (col < pad + W)
        xv = jnp.where(valid, xv, 0.0)

    # ---- 5) im2col: all K*K taps packed along the contraction dim -> ONE MXU matmul ----
    taps = [xv[kh:kh + TH, kw:kw + W, :] for kh in range(K) for kw in range(K)]
    slab = jnp.concatenate(taps, axis=-1).reshape(TH * W, K * K * ci).astype(jnp.bfloat16)
    acc = jnp.dot(slab, w2d, preferred_element_type=jnp.float32)
    acc = acc + bias
    if has_res:
        acc = acc + r_ref[0].reshape(TH * W, co).astype(jnp.float32)
    o_ref[0] = acc.reshape(TH, W, co).astype(o_ref.dtype)


def conv3x3_pallas(x_nhwc, w_hwio, bias, *, scale=None, shift=None, pre_silu=False,
                   residual=None, block_h=8):
    bsz, H, W, ci = x_nhwc.shape
    K = w_hwio.shape[0]
    co = w_hwio.shape[-1]
    pad = (K - 1) // 2
    TH = _pick_band(H, block_h, min_rows=max(pad, 2))
    nh = H // TH
    has_aff = scale is not None
    has_res = residual is not None

    in_specs = [pl.BlockSpec(memory_space=pl.ANY)]                    # raw HBM, manual band DMA
    args = [x_nhwc]
    if has_aff:
        in_specs += [pl.BlockSpec((1, 1, ci), lambda b, h: (b, 0, 0)),
                     pl.BlockSpec((1, 1, ci), lambda b, h: (b, 0, 0))]
        args += [scale.reshape(bsz, 1, ci).astype(jnp.float32),
                 shift.reshape(bsz, 1, ci).astype(jnp.float32)]
    in_specs += [pl.BlockSpec((K * K * ci, co), lambda b, h: (0, 0)),
                 pl.BlockSpec((1, co), lambda b, h: (0, 0))]
    args += [w_hwio.reshape(K * K * ci, co), bias.reshape(1, co)]
    if has_res:
        in_specs.append(pl.BlockSpec((1, TH, W, co), lambda b, h: (b, h, 0, 0)))
        args.append(residual)

    itemsize = jnp.dtype(x_nhwc.dtype).itemsize
    vmem = itemsize * ((TH + 2 * pad) * (W + 2 * pad) * ci * 3        # scratch + activated band
                       + 2 * TH * W * (K * K * ci + co)               # im2col slab + output blocks
                       + 2 * K * K * ci * co) + (2 << 20)

    return pl.pallas_call(
        functools.partial(_conv3x3_kernel, H=H, W=W, K=K, TH=TH, nh=nh,
                          pre_silu=pre_silu, has_aff=has_aff, has_res=has_res),
        out_shape=jax.ShapeDtypeStruct((bsz, H, W, co), x_nhwc.dtype),
        grid_spec=pltpu.PrefetchScalarGridSpec(
            num_scalar_prefetch=0,
            grid=(bsz, nh),
            in_specs=in_specs,
            out_specs=pl.BlockSpec((1, TH, W, co), lambda b, h: (b, h, 0, 0)),
            scratch_shapes=[pltpu.VMEM((TH + 2 * pad, W + 2 * pad, ci), x_nhwc.dtype),
                            pltpu.SemaphoreType.DMA((1,))],
        ),
        compiler_params=_mosaic_params(("parallel", "parallel"), vmem),
    )(*args)


# ----------------------------------------------------------------------------- depthwise 5x5 + GELU (+ residual) kernel
def _dwconv_gelu_kernel(x_hbm, w_ref, b_ref, o_ref, xs, sem, *, H, W, K, TH, nh):
    lb = pl.program_id(0)
    hb = pl.program_id(1)
    pad = (K - 1) // 2
    halo = 2 * pad
    lane = o_ref.shape[-1]

    def _mk(src_row, dst_row, rows):
        # DMA straight into the padded scratch interior (no xs_raw + VMEM->VMEM copy anymore)
        return pltpu.make_async_copy(
            x_hbm.at[lb, pl.ds(src_row, rows)],
            xs.at[pl.ds(dst_row, rows), pl.ds(pad, W)],
            sem.at[0])

    if nh == 1:
        xs[0:pad] = jnp.zeros((pad, W + halo, lane), xs.dtype)
        xs[TH + pad:] = jnp.zeros((pad, W + halo, lane), xs.dtype)
        _mk(0, pad, H).start()
    else:
        @pl.when(hb == 0)
        def _():
            xs[0:pad] = jnp.zeros((pad, W + halo, lane), xs.dtype)
            _mk(0, pad, TH + pad).start()

        @pl.when(hb == nh - 1)
        def _():
            xs[TH + pad:] = jnp.zeros((pad, W + halo, lane), xs.dtype)
            _mk(H - TH - pad, 0, TH + pad).start()

        @pl.when(jnp.logical_and(hb > 0, hb < nh - 1))
        def _():
            _mk(hb * TH - pad, 0, TH + halo).start()

    # overlap the halo DMA with side-column zeroing and the weight/bias preload
    xs[:, 0:pad, :] = jnp.zeros((TH + halo, pad, lane), xs.dtype)
    xs[:, pad + W:, :] = jnp.zeros((TH + halo, pad, lane), xs.dtype)
    w_all = w_ref[0].astype(jnp.float32)                   # (K*K, lane)
    bias = b_ref[0, 0].astype(jnp.float32)                 # (lane,)

    if nh == 1:
        _mk(0, pad, H).wait()
    else:
        @pl.when(hb == 0)
        def _():
            _mk(0, pad, TH + pad).wait()

        @pl.when(hb == nh - 1)
        def _():
            _mk(H - TH - pad, 0, TH + pad).wait()

        @pl.when(jnp.logical_and(hb > 0, hb < nh - 1))
        def _():
            _mk(hb * TH - pad, 0, TH + halo).wait()

    # depthwise conv: K shifted column loads, kh as free major-axis slices, f32 accumulation
    acc = jnp.zeros((TH, W, lane), jnp.float32)
    for kw in range(K):
        col = xs[:, kw:kw + W, :].astype(jnp.float32)       # (TH+halo, W, lane)
        for kh in range(K):
            acc = acc + col[kh:kh + TH] * w_all[kh * K + kw]
    y = _gelu_exact(acc + bias)
    # fused ConvFFN residual: x + GELU(dwconv(x)); the band centre is already resident in VMEM
    y = y + xs[pad:pad + TH, pad:pad + W, :].astype(jnp.float32)
    o_ref[0] = y.astype(o_ref.dtype)                        # lane-dense (128) unmasked stores


def dwconv_gelu_pallas(x, x_size, weight, bias, block_h=8):
    """x + GELU(depthwise KxK conv(x)) on (B, N, C) tokens (the ConvFFN `x + dwconv(x)` branch)."""
    B, N, C = x.shape
    H, W = x_size
    assert N == H * W
    K = weight.shape[0]
    pad = (K - 1) // 2
    halo = 2 * pad

    # lane-dense packing: fold (batch, channel) into the 128-lane axis (depthwise weights are
    # batch-invariant, so broadcasting them over batch is legal)
    bc = B * C
    lanes_total = _round_up(bc, _LANE)
    nl = lanes_total // _LANE

    x_hw = x.reshape(B, H, W, C).transpose(1, 2, 0, 3).reshape(H, W, bc)
    if lanes_total != bc:
        x_hw = jnp.pad(x_hw, ((0, 0), (0, 0), (0, lanes_total - bc)))
    x_pk = x_hw.reshape(H, W, nl, _LANE).transpose(2, 0, 1, 3)                 # (nl, H, W, 128)

    w_bc = jnp.tile(weight, (1, 1, B))
    if lanes_total != bc:
        w_bc = jnp.pad(w_bc, ((0, 0), (0, 0), (0, lanes_total - bc)))
    w_pk = w_bc.reshape(K, K, nl, _LANE).transpose(2, 0, 1, 3).reshape(nl, K * K, _LANE)

    b_bc = jnp.tile(bias, (B,))
    if lanes_total != bc:
        b_bc = jnp.pad(b_bc, (0, lanes_total - bc))
    b_pk = b_bc.reshape(nl, 1, _LANE)

    TH = _pick_band(H, block_h, min_rows=max(pad, 2))
    nh = H // TH

    dtype = x.dtype
    itemsize = jnp.dtype(dtype).itemsize
    vmem = itemsize * ((TH + halo) * (W + halo) * _LANE
                       + 2 * TH * W * _LANE
                       + 2 * K * K * _LANE + 2 * _LANE) + (2 << 20)

    out_pk = pl.pallas_call(
        functools.partial(_dwconv_gelu_kernel, H=H, W=W, K=K, TH=TH, nh=nh),
        out_shape=jax.ShapeDtypeStruct((nl, H, W, _LANE), dtype),
        grid_spec=pltpu.PrefetchScalarGridSpec(
            num_scalar_prefetch=0,
            grid=(nl, nh),
            in_specs=[
                pl.BlockSpec(memory_space=pl.ANY),                             # raw HBM, manual DMA
                pl.BlockSpec((1, K * K, _LANE), lambda l, h: (l, 0, 0)),
                pl.BlockSpec((1, 1, _LANE), lambda l, h: (l, 0, 0)),
            ],
            out_specs=pl.BlockSpec((1, TH, W, _LANE), lambda l, h: (l, h, 0, 0)),
            scratch_shapes=[
                pltpu.VMEM((TH + halo, W + halo, _LANE), dtype),
                pltpu.SemaphoreType.DMA((1,)),
            ],
        ),
        compiler_params=_mosaic_params(("parallel", "parallel"), vmem),
    )(x_pk, w_pk, b_pk)

    out = out_pk.transpose(1, 2, 0, 3).reshape(H, W, lanes_total)[:, :, :bc]
    out = out.reshape(H, W, B, C).transpose(2, 0, 1, 3).reshape(B, N, C)
    return out


# ----------------------------------------------------------------------------- XLA glue + pure-XLA reference ops
def _gn_affine(x_img, gamma, beta, groups=32, eps=1e-5):
    """GroupNorm folded into a per-(batch, channel) affine (stats stay in XLA, apply is fused
    into the conv kernel)."""
    b, h, w, c = x_img.shape
    g = groups
    xg = x_img.reshape(b, h * w, g, c // g).astype(jnp.float32)
    mean = jnp.mean(xg, axis=(1, 3))                                   # (b, g)
    xc = xg - mean[:, None, :, None]
    var = jnp.mean(xc * xc, axis=(1, 3))
    rstd = jax.lax.rsqrt(var + eps)
    mean_c = jnp.repeat(mean, c // g, axis=-1)                         # (b, c)
    rstd_c = jnp.repeat(rstd, c // g, axis=-1)
    scale = rstd_c * gamma[None]
    shift = beta[None] - mean_c * rstd_c * gamma[None]
    return scale, shift


def group_norm_ref(x_nhwc, gamma, beta, num_groups=32, eps=1e-5):
    b, h, w, c = x_nhwc.shape
    g = num_groups
    xg = x_nhwc.reshape(b, h * w, g, c // g).astype(jnp.float32)
    mean = jnp.mean(xg, axis=(1, 3), keepdims=True)
    var = jnp.mean(jnp.square(xg - mean), axis=(1, 3), keepdims=True)
    xn = ((xg - mean) * jax.lax.rsqrt(var + eps)).reshape(b, h, w, c)
    return (xn * gamma + beta).astype(x_nhwc.dtype)


def _ln_ref(x, g, b, eps=1e-5):
    xf = x.astype(jnp.float32)
    mu = jnp.mean(xf, axis=-1, keepdims=True)
    var = jnp.mean(jnp.square(xf - mu), axis=-1, keepdims=True)
    return ((xf - mu) * jax.lax.rsqrt(var + eps) * g + b).astype(x.dtype)


def _conv3x3_ref(x_nhwc, w, b):
    y = jax.lax.conv_general_dilated(
        x_nhwc.astype(jnp.float32), w.astype(jnp.float32), (1, 1), "SAME",
        dimension_numbers=("NHWC", "HWIO", "NHWC")) + b
    return y.astype(x_nhwc.dtype)


def _dwconv_gelu_ref(x, x_size, w, b):
    B, N, C = x.shape
    H, W = x_size
    K = w.shape[0]
    xi = x.reshape(B, H, W, C).astype(jnp.float32)
    y = jax.lax.conv_general_dilated(
        xi, w.reshape(K, K, 1, C).astype(jnp.float32), (1, 1), "SAME",
        dimension_numbers=("NHWC", "HWIO", "NHWC"), feature_group_count=C) + b
    return x + _gelu_exact(y).reshape(B, N, C).astype(x.dtype)


# ----------------------------------------------------------------------------- module forward
def resblock_forward(x_img, emb, p, use_pallas):
    if not use_pallas:
        h = _conv3x3_ref(_silu(group_norm_ref(x_img, p["gn1_w"], p["gn1_b"])),
                         p["conv1_w"], p["conv1_b"])
        emb_out = _silu(emb.astype(jnp.float32)) @ p["emb_w"] + p["emb_b"]
        scale, shift = jnp.split(emb_out, 2, axis=-1)
        h = group_norm_ref(h, p["gn2_w"], p["gn2_b"]) * (1.0 + scale[:, None, None, :]) \
            + shift[:, None, None, :]
        h = _conv3x3_ref(_silu(h), p["conv2_w"], p["conv2_b"])
        return x_img + h

    # Pallas path: GroupNorm stats in XLA, GN-affine + SiLU + residual fused into the conv kernels.
    a1, d1 = _gn_affine(x_img, p["gn1_w"], p["gn1_b"])
    h = conv3x3_pallas(x_img, p["conv1_w"], p["conv1_b"],
                       scale=a1, shift=d1, pre_silu=True)
    # emb_layers: SiLU -> Linear -> (B, 2C)  (use_scale_shift_norm=True), fused into one kernel
    emb_out = linear_pallas(emb, p["emb_w"], p["emb_b"], pre="silu")
    s, t = jnp.split(emb_out.astype(jnp.float32), 2, axis=-1)
    a2, d2 = _gn_affine(h, p["gn2_w"], p["gn2_b"])
    scale2 = a2 * (1.0 + s)
    shift2 = d2 * (1.0 + s) + t
    # TODO(synk): Dropout(p=0.1) is eval-mode identity here (no train-mode RNG).
    return conv3x3_pallas(h, p["conv2_w"], p["conv2_b"],
                          scale=scale2, shift=shift2, pre_silu=True, residual=x_img)


def swinblock_forward(x, x_size, p, rpi, attn_mask, window_size, num_heads,
                      shift_size, use_pallas):
    H, W = x_size
    B, N, C = x.shape
    ws = window_size
    nwh, nww = H // ws, W // ws
    nw = nwh * nww
    n = ws * ws
    hd = C // num_heads
    shortcut = x

    rpb = p["rpb"][rpi.reshape(-1)].reshape(n, n, num_heads).transpose(2, 0, 1).astype(jnp.float32)

    if use_pallas:
        # fused LayerNorm1 + QKV projection
        qkv = linear_pallas(x.reshape(B * N, C), p["qkv_w"], p["qkv_b"],
                            pre="ln", ln_params=(p["ln1_w"], p["ln1_b"]))
        qkv = qkv.reshape(B, H, W, 3 * C)
        if shift_size > 0:
            qkv = jnp.roll(qkv, (-shift_size, -shift_size), axis=(1, 2))
            mask = attn_mask
        else:
            mask = jnp.zeros((nw, n, n), jnp.float32)
        attn = window_attention_pallas(qkv, rpb, mask, p["proj_w"], p["proj_b"],
                                       num_heads, ws, hd ** -0.5)
        if shift_size > 0:
            attn = jnp.roll(attn, (shift_size, shift_size), axis=(1, 2))
        x = shortcut + attn.reshape(B, N, C)

        # ConvFFN: LN2 + fc1 + GELU fused, dwconv (+residual) fused, fc2 + residual fused
        hidden = p["fc1_w"].shape[1]
        h1 = linear_pallas(x.reshape(B * N, C), p["fc1_w"], p["fc1_b"],
                           pre="ln", ln_params=(p["ln2_w"], p["ln2_b"]), activation="gelu")
        h1 = dwconv_gelu_pallas(h1.reshape(B, N, hidden), x_size, p["dw_w"], p["dw_b"])
        out = linear_pallas(h1.reshape(B * N, hidden), p["fc2_w"], p["fc2_b"],
                            residual=x.reshape(B * N, C))
        return out.reshape(B, N, C)

    # ---- pure-XLA reference ----
    xn = _ln_ref(x, p["ln1_w"], p["ln1_b"])
    qkv = xn @ p["qkv_w"] + p["qkv_b"]
    qkv = qkv.reshape(B, H, W, 3 * C)
    if shift_size > 0:
        qkv = jnp.roll(qkv, (-shift_size, -shift_size), axis=(1, 2))
    qkv = qkv.reshape(B, nwh, ws, nww, ws, 3 * C).transpose(0, 1, 3, 2, 4, 5).reshape(B, nw, n, 3 * C)
    qkv = qkv.reshape(B, nw, n, 3, num_heads, hd).transpose(3, 0, 1, 4, 2, 5)
    q, k, v = qkv[0], qkv[1], qkv[2]
    s = jnp.einsum("bwhqd,bwhkd->bwhqk", q * (hd ** -0.5), k)
    s = s + rpb[None, None]
    if shift_size > 0:
        s = s + attn_mask[None, :, None]
    s = jax.nn.softmax(s, axis=-1)
    o = jnp.einsum("bwhqk,bwhkd->bwhqd", s, v)
    o = o.transpose(0, 1, 3, 2, 4).reshape(B, nw, n, C)
    o = o @ p["proj_w"] + p["proj_b"]
    o = o.reshape(B, nwh, nww, ws, ws, C).transpose(0, 1, 3, 2, 4, 5).reshape(B, H, W, C)
    if shift_size > 0:
        o = jnp.roll(o, (shift_size, shift_size), axis=(1, 2))
    x = shortcut + o.reshape(B, N, C)
    y = _ln_ref(x, p["ln2_w"], p["ln2_b"])
    h1 = _gelu_exact(y @ p["fc1_w"] + p["fc1_b"])
    h1 = _dwconv_gelu_ref(h1, x_size, p["dw_w"], p["dw_b"])
    out = h1 @ p["fc2_w"] + p["fc2_b"]
    return x + out


def basic_block_forward(x, emb, x_size, params, weights, cfg, use_pallas=True):
    H, W = x_size
    B, N, C = x.shape
    x0 = x
    for i, lw in enumerate(weights["layers"]):
        # patch_unembed / patch_embed are pure layout (torch goes through NCHW; we use NHWC)
        x_img = x.reshape(B, H, W, C)
        x_img = resblock_forward(x_img, emb, lw["res"], use_pallas)
        x = x_img.reshape(B, N, C)
        shift = 0 if i % 2 == 0 else cfg["window_size"] // 2
        x = swinblock_forward(x, x_size, lw["swin"], params["rpi_sa"],
                              params.get("attn_mask"), cfg["window_size"],
                              cfg["num_heads"], shift, use_pallas)
    # downsample=None. Final: x0 + patch_embed(conv3x3(patch_unembed(x)))
    if use_pallas:
        y = conv3x3_pallas(x.reshape(B, H, W, C), weights["conv_w"], weights["conv_b"],
                           residual=x0.reshape(B, H, W, C))
        return y.reshape(B, N, C)
    y = _conv3x3_ref(x.reshape(B, H, W, C), weights["conv_w"], weights["conv_b"])
    return x0 + y.reshape(B, N, C)


# ----------------------------------------------------------------------------- setup (params, rpi, mask)
def compute_rpi(ws):
    coords = np.stack(np.meshgrid(np.arange(ws), np.arange(ws), indexing="ij"))
    cf = coords.reshape(2, -1)
    rel = cf[:, :, None] - cf[:, None, :]
    rel = rel.transpose(1, 2, 0).astype(np.int64)
    rel[:, :, 0] += ws - 1
    rel[:, :, 1] += ws - 1
    rel[:, :, 0] *= 2 * ws - 1
    return jnp.asarray(rel.sum(-1).astype(np.int32))


def compute_attn_mask(H, W, ws, shift):
    img = np.zeros((H, W))
    cnt = 0
    for hs in (slice(0, -ws), slice(-ws, -shift), slice(-shift, None)):
        for wsl in (slice(0, -ws), slice(-ws, -shift), slice(-shift, None)):
            img[hs, wsl] = cnt
            cnt += 1
    mw = img.reshape(H // ws, ws, W // ws, ws).transpose(0, 2, 1, 3).reshape(-1, ws * ws)
    diff = mw[:, None, :] - mw[:, :, None]
    return jnp.asarray(np.where(diff != 0, -100.0, 0.0).astype(np.float32))


def init_basic_block_params(key, cfg):
    C = cfg["dim"]
    E = cfg["time_emb_dim"]
    hs = int(C * cfg["mlp_ratio"])
    ws = cfg["window_size"]
    heads = cfg["num_heads"]
    K = cfg["convffn_kernel_size"]
    keys = iter(jax.random.split(key, 256))
    nk = lambda: next(keys)

    def nrm(shape, scale):
        return (scale * jax.random.normal(nk(), shape)).astype(jnp.float32)

    layers = []
    for _ in range(cfg["depth"]):
        res = dict(
            gn1_w=1.0 + nrm((C,), 0.05), gn1_b=nrm((C,), 0.05),
            conv1_w=nrm((3, 3, C, C), 0.05), conv1_b=nrm((C,), 0.05),
            emb_w=nrm((E, 2 * C), 0.05), emb_b=nrm((2 * C,), 0.05),
            gn2_w=1.0 + nrm((C,), 0.05), gn2_b=nrm((C,), 0.05),
            conv2_w=nrm((3, 3, C, C), 0.05), conv2_b=nrm((C,), 0.05))
        swin = dict(
            ln1_w=1.0 + nrm((C,), 0.05), ln1_b=nrm((C,), 0.05),
            qkv_w=nrm((C, 3 * C), 0.05), qkv_b=nrm((3 * C,), 0.05),
            rpb=nrm(((2 * ws - 1) ** 2, heads), 0.02),
            proj_w=nrm((C, C), 0.05), proj_b=nrm((C,), 0.05),
            ln2_w=1.0 + nrm((C,), 0.05), ln2_b=nrm((C,), 0.05),
            fc1_w=nrm((C, hs), 0.05), fc1_b=nrm((hs,), 0.05),
            dw_w=nrm((K, K, hs), 0.1), dw_b=nrm((hs,), 0.1),
            fc2_w=nrm((hs, C), 0.05), fc2_b=nrm((C,), 0.05))
        layers.append(dict(res=res, swin=swin))
    return dict(layers=layers, conv_w=nrm((3, 3, C, C), 0.05), conv_b=nrm((C,), 0.05))


# ----------------------------------------------------------------------------- main
if __name__ == "__main__":
    cfg = dict(dim=64, input_resolution=(16, 16), depth=2, time_emb_dim=64,
               num_heads=4, window_size=8, convffn_kernel_size=5, mlp_ratio=2.0)
    B = 2
    H, W = cfg["input_resolution"]
    C = cfg["dim"]
    N = H * W

    key = jax.random.PRNGKey(0)
    kx, ke, kw, kt = jax.random.split(key, 4)
    x = jax.random.normal(kx, (B, N, C), dtype=jnp.float32)
    emb = jax.random.normal(ke, (B, cfg["time_emb_dim"]), dtype=jnp.float32)
    weights = init_basic_block_params(kw, cfg)

    params = dict(
        rpi_sa=compute_rpi(cfg["window_size"]),
        attn_mask=compute_attn_mask(H, W, cfg["window_size"], cfg["window_size"] // 2))

    # 1) isolated check of the Pallas depthwise-conv+GELU(+fused residual) kernel: f32 VPU math,
    #    so it stays on a tight tolerance against lax.conv_general_dilated(feature_group_count=C).
    hidden = int(C * cfg["mlp_ratio"])
    xt = jax.random.normal(kt, (B, N, hidden), dtype=jnp.float32)
    dw_w = weights["layers"][0]["swin"]["dw_w"]
    dw_b = weights["layers"][0]["swin"]["dw_b"]
    dw_p = jax.block_until_ready(dwconv_gelu_pallas(xt, (H, W), dw_w, dw_b))
    dw_r = _dwconv_gelu_ref(xt, (H, W), dw_w, dw_b)
    dw_err = float(jnp.max(jnp.abs(dw_p - dw_r)))
    assert dw_err < 2e-3, f"dwconv kernel mismatch vs lax depthwise conv: {dw_err}"

    # 2) full BasicBlock forward: Pallas kernels (bf16 MXU inputs, f32 accumulation) vs a pure-f32
    #    XLA reference -> relaxed tolerance to cover the bf16 rounding of the matmul operands.
    out_p = basic_block_forward(x, emb, (H, W), params, weights, cfg, use_pallas=True)
    out_p = jax.block_until_ready(out_p)
    assert out_p.shape == (B, N, C)
    assert bool(jnp.all(jnp.isfinite(out_p))), "non-finite values in Pallas output"
    out_r = basic_block_forward(x, emb, (H, W), params, weights, cfg, use_pallas=False)
    rel = float(jnp.max(jnp.abs(out_p - out_r)) / (jnp.max(jnp.abs(out_r)) + 1e-6))
    assert rel < 5e-2, f"BasicBlock forward mismatch: rel={rel}"

    print("KERNEL_OK")
</pallas_src>

<mosaic_0001>
module attributes {stable_mosaic.version = 11 : i64} {
  func.func @_dwconv_gelu_kernel(%arg0: i32, %arg1: i32, %arg2: memref<2x16x16x128xf32, #tpu.memory_space<any>>, %arg3: memref<1x25x128xf32, #tpu.memory_space<vmem>>, %arg4: memref<1x1x128xf32, #tpu.memory_space<vmem>>, %arg5: memref<1x8x16x128xf32, #tpu.memory_space<vmem>>, %arg6: memref<12x20x128xf32, #tpu.memory_space<vmem>>, %arg7: memref<1x!tpu.dma_semaphore, #tpu.memory_space<semaphore_mem>>) attributes {dimension_semantics = [#tpu.dimension_semantics<parallel>, #tpu.dimension_semantics<parallel>], iteration_bounds = array<i64: 2, 2>, scalar_prefetch = 0 : i64, scratch_operands = 2 : i64, tpu.core_type = #tpu.core_type<tc>, window_params = [{}, {transform_indices = @transform_1, window_bounds = array<i64: 1, 25, 128>}, {transform_indices = @transform_2, window_bounds = array<i64: 1, 1, 128>}, {transform_indices = @transform_3, window_bounds = array<i64: 1, 8, 16, 128>}]} {
    %c0_i32 = arith.constant 0 : i32
    %0 = arith.cmpi eq, %arg1, %c0_i32 : i32
    %1 = arith.extui %0 : i1 to i32
    %c0_i32_0 = arith.constant 0 : i32
    %2 = arith.cmpi ne, %1, %c0_i32_0 : i32
    scf.if %2 {
      %cst_45 = arith.constant 0.000000e+00 : f32
      %227 = vector.broadcast %cst_45 : f32 to vector<2x20x128xf32>
      %c0_46 = arith.constant 0 : index
      %c0_47 = arith.constant 0 : index
      %c0_48 = arith.constant 0 : index
      %228 = vector.load %arg6[%c0_46, %c0_47, %c0_48] : memref<12x20x128xf32, #tpu.memory_space<vmem>>, vector<2x20x128xf32>
      tpu.vector_store %arg6[%c0_46, %c0_47, %c0_48], %227 {strides = array<i32>} : memref<12x20x128xf32, #tpu.memory_space<vmem>>, vector<2x20x128xf32>,
      %c0_i32_49 = arith.constant 0 : i32
      %c0_i32_50 = arith.constant 0 : i32
      %c0_i32_51 = arith.constant 0 : i32
      %c0_i32_52 = arith.constant 0 : i32
      %229 = tpu.memref_slice %arg2[%arg0, %c0_i32_50, %c0_i32_51, %c0_i32_52] : memref<2x16x16x128xf32, #tpu.memory_space<any>> -> memref<1x10x16x128xf32, #tpu.memory_space<any>>
      %230 = tpu.memref_squeeze %229 : memref<1x10x16x128xf32, #tpu.memory_space<any>> -> memref<10x16x128xf32, #tpu.memory_space<any>>
      %c2_i32 = arith.constant 2 : i32
      %c2_i32_53 = arith.constant 2 : i32
      %c0_i32_54 = arith.constant 0 : i32
      %231 = tpu.memref_slice %arg6[%c2_i32, %c2_i32_53, %c0_i32_54] : memref<12x20x128xf32, #tpu.memory_space<vmem>> -> memref<10x16x128xf32, #tpu.memory_space<vmem>>
      %232 = tpu.memref_slice %arg7[%c0_i32_49] : memref<1x!tpu.dma_semaphore, #tpu.memory_space<semaphore_mem>> -> memref<1x!tpu.dma_semaphore, #tpu.memory_space<semaphore_mem>>
      %233 = tpu.memref_squeeze %232 : memref<1x!tpu.dma_semaphore, #tpu.memory_space<semaphore_mem>> -> memref<!tpu.dma_semaphore, #tpu.memory_space<semaphore_mem>>
      tpu.enqueue_dma source(%230 : memref<10x16x128xf32, #tpu.memory_space<any>>) target(%231 : memref<10x16x128xf32, #tpu.memory_space<vmem>>) target_semaphore(%233 : memref<!tpu.dma_semaphore, #tpu.memory_space<semaphore_mem>>)
    } else {
    }
    %c1_i32 = arith.constant 1 : i32
    %3 = arith.cmpi eq, %arg1, %c1_i32 : i32
    %4 = arith.extui %3 : i1 to i32
    %c0_i32_1 = arith.constant 0 : i32
    %5 = arith.cmpi ne, %4, %c0_i32_1 : i32
    scf.if %5 {
      %cst_45 = arith.constant 0.000000e+00 : f32
      %227 = vector.broadcast %cst_45 : f32 to vector<2x20x128xf32>
      %c10 = arith.constant 10 : index
      %c0_46 = arith.constant 0 : index
      %c0_47 = arith.constant 0 : index
      %228 = vector.load %arg6[%c10, %c0_46, %c0_47] : memref<12x20x128xf32, #tpu.memory_space<vmem>>, vector<2x20x128xf32>
      tpu.vector_store %arg6[%c10, %c0_46, %c0_47], %227 {strides = array<i32>} : memref<12x20x128xf32, #tpu.memory_space<vmem>>, vector<2x20x128xf32>,
      %c0_i32_48 = arith.constant 0 : i32
      %c6_i32 = arith.constant 6 : i32
      %c0_i32_49 = arith.constant 0 : i32
      %c0_i32_50 = arith.constant 0 : i32
      %229 = tpu.memref_slice %arg2[%arg0, %c6_i32, %c0_i32_49, %c0_i32_50] : memref<2x16x16x128xf32, #tpu.memory_space<any>> -> memref<1x10x16x128xf32, #tpu.memory_space<any>>
      %230 = tpu.memref_squeeze %229 : memref<1x10x16x128xf32, #tpu.memory_space<any>> -> memref<10x16x128xf32, #tpu.memory_space<any>>
      %c0_i32_51 = arith.constant 0 : i32
      %c2_i32 = arith.constant 2 : i32
      %c0_i32_52 = arith.constant 0 : i32
      %231 = tpu.memref_slice %arg6[%c0_i32_51, %c2_i32, %c0_i32_52] : memref<12x20x128xf32, #tpu.memory_space<vmem>> -> memref<10x16x128xf32, #tpu.memory_space<vmem>>
      %232 = tpu.memref_slice %arg7[%c0_i32_48] : memref<1x!tpu.dma_semaphore, #tpu.memory_space<semaphore_mem>> -> memref<1x!tpu.dma_semaphore, #tpu.memory_space<semaphore_mem>>
      %233 = tpu.memref_squeeze %232 : memref<1x!tpu.dma_semaphore, #tpu.memory_space<semaphore_mem>> -> memref<!tpu.dma_semaphore, #tpu.memory_space<semaphore_mem>>
      tpu.enqueue_dma source(%230 : memref<10x16x128xf32, #tpu.memory_space<any>>) target(%231 : memref<10x16x128xf32, #tpu.memory_space<vmem>>) target_semaphore(%233 : memref<!tpu.dma_semaphore, #tpu.memory_space<semaphore_mem>>)
    } else {
    }
    %c0_i32_2 = arith.constant 0 : i32
    %6 = arith.cmpi sgt, %arg1, %c0_i32_2 : i32
    %c1_i32_3 = arith.constant 1 : i32
    %7 = arith.cmpi slt, %arg1, %c1_i32_3 : i32
    %8 = arith.andi %6, %7 : i1
    %9 = arith.extui %8 : i1 to i32
    %c0_i32_4 = arith.constant 0 : i32
    %10 = arith.cmpi ne, %9, %c0_i32_4 : i32
    scf.if %10 {
      %c8_i32 = arith.constant 8 : i32
      %227 = arith.muli %arg1, %c8_i32 : i32
      %c2_i32 = arith.constant 2 : i32
      %228 = arith.subi %227, %c2_i32 : i32
      %c0_i32_45 = arith.constant 0 : i32
      %c0_i32_46 = arith.constant 0 : i32
      %c0_i32_47 = arith.constant 0 : i32
      %229 = tpu.memref_slice %arg2[%arg0, %228, %c0_i32_46, %c0_i32_47] : memref<2x16x16x128xf32, #tpu.memory_space<any>> -> memref<1x12x16x128xf32, #tpu.memory_space<any>>
      %230 = tpu.memref_squeeze %229 : memref<1x12x16x128xf32, #tpu.memory_space<any>> -> memref<12x16x128xf32, #tpu.memory_space<any>>
      %c0_i32_48 = arith.constant 0 : i32
      %c2_i32_49 = arith.constant 2 : i32
      %c0_i32_50 = arith.constant 0 : i32
      %231 = tpu.memref_slice %arg6[%c0_i32_48, %c2_i32_49, %c0_i32_50] : memref<12x20x128xf32, #tpu.memory_space<vmem>> -> memref<12x16x128xf32, #tpu.memory_space<vmem>>
      %232 = tpu.memref_slice %arg7[%c0_i32_45] : memref<1x!tpu.dma_semaphore, #tpu.memory_space<semaphore_mem>> -> memref<1x!tpu.dma_semaphore, #tpu.memory_space<semaphore_mem>>
      %233 = tpu.memref_squeeze %232 : memref<1x!tpu.dma_semaphore, #tpu.memory_space<semaphore_mem>> -> memref<!tpu.dma_semaphore, #tpu.memory_space<semaphore_mem>>
      tpu.enqueue_dma source(%230 : memref<12x16x128xf32, #tpu.memory_space<any>>) target(%231 : memref<12x16x128xf32, #tpu.memory_space<vmem>>) target_semaphore(%233 : memref<!tpu.dma_semaphore, #tpu.memory_space<semaphore_mem>>)
    } else {
    }
    %cst = arith.constant 0.000000e+00 : f32
    %11 = vector.broadcast %cst : f32 to vector<12x2x128xf32>
    %c0 = arith.constant 0 : index
    %c0_5 = arith.constant 0 : index
    %c0_6 = arith.constant 0 : index
    %12 = vector.load %arg6[%c0, %c0_5, %c0_6] : memref<12x20x128xf32, #tpu.memory_space<vmem>>, vector<12x2x128xf32>
    tpu.vector_store %arg6[%c0, %c0_5, %c0_6], %11 {strides = array<i32>} : memref<12x20x128xf32, #tpu.memory_space<vmem>>, vector<12x2x128xf32>,
    %cst_7 = arith.constant 0.000000e+00 : f32
    %13 = vector.broadcast %cst_7 : f32 to vector<12x2x128xf32>
    %c0_8 = arith.constant 0 : index
    %c18 = arith.constant 18 : index
    %c0_9 = arith.constant 0 : index
    %14 = vector.load %arg6[%c0_8, %c18, %c0_9] : memref<12x20x128xf32, #tpu.memory_space<vmem>>, vector<12x2x128xf32>
    tpu.vector_store %arg6[%c0_8, %c18, %c0_9], %13 {strides = array<i32>} : memref<12x20x128xf32, #tpu.memory_space<vmem>>, vector<12x2x128xf32>,
    %c0_10 = arith.constant 0 : index
    %c0_11 = arith.constant 0 : index
    %c0_12 = arith.constant 0 : index
    %15 = vector.load %arg3[%c0_10, %c0_11, %c0_12] : memref<1x25x128xf32, #tpu.memory_space<vmem>>, vector<1x25x128xf32>
    %16 = vector.shape_cast %15 : vector<1x25x128xf32> to vector<25x128xf32>
    %c0_13 = arith.constant 0 : index
    %c0_14 = arith.constant 0 : index
    %c0_15 = arith.constant 0 : index
    %17 = vector.load %arg4[%c0_13, %c0_14, %c0_15] : memref<1x1x128xf32, #tpu.memory_space<vmem>>, vector<1x1x128xf32>
    %18 = vector.shape_cast %17 : vector<1x1x128xf32> to vector<128xf32>
    %c0_i32_16 = arith.constant 0 : i32
    %19 = arith.cmpi eq, %arg1, %c0_i32_16 : i32
    %20 = arith.extui %19 : i1 to i32
    %c0_i32_17 = arith.constant 0 : i32
    %21 = arith.cmpi ne, %20, %c0_i32_17 : i32
    scf.if %21 {
      %c0_i32_45 = arith.constant 0 : i32
      %c0_i32_46 = arith.constant 0 : i32
      %c0_i32_47 = arith.constant 0 : i32
      %c0_i32_48 = arith.constant 0 : i32
      %227 = tpu.memref_slice %arg2[%arg0, %c0_i32_46, %c0_i32_47, %c0_i32_48] : memref<2x16x16x128xf32, #tpu.memory_space<any>> -> memref<1x10x16x128xf32, #tpu.memory_space<any>>
      %228 = tpu.memref_squeeze %227 : memref<1x10x16x128xf32, #tpu.memory_space<any>> -> memref<10x16x128xf32, #tpu.memory_space<any>>
      %c2_i32 = arith.constant 2 : i32
      %c2_i32_49 = arith.constant 2 : i32
      %c0_i32_50 = arith.constant 0 : i32
      %229 = tpu.memref_slice %arg6[%c2_i32, %c2_i32_49, %c0_i32_50] : memref<12x20x128xf32, #tpu.memory_space<vmem>> -> memref<10x16x128xf32, #tpu.memory_space<vmem>>
      %230 = tpu.memref_slice %arg7[%c0_i32_45] : memref<1x!tpu.dma_semaphore, #tpu.memory_space<semaphore_mem>> -> memref<1x!tpu.dma_semaphore, #tpu.memory_space<semaphore_mem>>
      %231 = tpu.memref_squeeze %230 : memref<1x!tpu.dma_semaphore, #tpu.memory_space<semaphore_mem>> -> memref<!tpu.dma_semaphore, #tpu.memory_space<semaphore_mem>>
      tpu.wait_dma2 semaphore(%231 : memref<!tpu.dma_semaphore, #tpu.memory_space<semaphore_mem>>) src(%228 : memref<10x16x128xf32, #tpu.memory_space<any>>) dst(%229 : memref<10x16x128xf32, #tpu.memory_space<vmem>>)
    } else {
    }
    %c1_i32_18 = arith.constant 1 : i32
    %22 = arith.cmpi eq, %arg1, %c1_i32_18 : i32
    %23 = arith.extui %22 : i1 to i32
    %c0_i32_19 = arith.constant 0 : i32
    %24 = arith.cmpi ne, %23, %c0_i32_19 : i32
    scf.if %24 {
      %c0_i32_45 = arith.constant 0 : i32
      %c6_i32 = arith.constant 6 : i32
      %c0_i32_46 = arith.constant 0 : i32
      %c0_i32_47 = arith.constant 0 : i32
      %227 = tpu.memref_slice %arg2[%arg0, %c6_i32, %c0_i32_46, %c0_i32_47] : memref<2x16x16x128xf32, #tpu.memory_space<any>> -> memref<1x10x16x128xf32, #tpu.memory_space<any>>
      %228 = tpu.memref_squeeze %227 : memref<1x10x16x128xf32, #tpu.memory_space<any>> -> memref<10x16x128xf32, #tpu.memory_space<any>>
      %c0_i32_48 = arith.constant 0 : i32
      %c2_i32 = arith.constant 2 : i32
      %c0_i32_49 = arith.constant 0 : i32
      %229 = tpu.memref_slice %arg6[%c0_i32_48, %c2_i32, %c0_i32_49] : memref<12x20x128xf32, #tpu.memory_space<vmem>> -> memref<10x16x128xf32, #tpu.memory_space<vmem>>
      %230 = tpu.memref_slice %arg7[%c0_i32_45] : memref<1x!tpu.dma_semaphore, #tpu.memory_space<semaphore_mem>> -> memref<1x!tpu.dma_semaphore, #tpu.memory_space<semaphore_mem>>
      %231 = tpu.memref_squeeze %230 : memref<1x!tpu.dma_semaphore, #tpu.memory_space<semaphore_mem>> -> memref<!tpu.dma_semaphore, #tpu.memory_space<semaphore_mem>>
      tpu.wait_dma2 semaphore(%231 : memref<!tpu.dma_semaphore, #tpu.memory_space<semaphore_mem>>) src(%228 : memref<10x16x128xf32, #tpu.memory_space<any>>) dst(%229 : memref<10x16x128xf32, #tpu.memory_space<vmem>>)
    } else {
    }
    %c0_i32_20 = arith.constant 0 : i32
    %25 = arith.cmpi sgt, %arg1, %c0_i32_20 : i32
    %c1_i32_21 = arith.constant 1 : i32
    %26 = arith.cmpi slt, %arg1, %c1_i32_21 : i32
    %27 = arith.andi %25, %26 : i1
    %28 = arith.extui %27 : i1 to i32
    %c0_i32_22 = arith.constant 0 : i32
    %29 = arith.cmpi ne, %28, %c0_i32_22 : i32
    scf.if %29 {
      %c8_i32 = arith.constant 8 : i32
      %227 = arith.muli %arg1, %c8_i32 : i32
      %c2_i32 = arith.constant 2 : i32
      %228 = arith.subi %227, %c2_i32 : i32
      %c0_i32_45 = arith.constant 0 : i32
      %c0_i32_46 = arith.constant 0 : i32
      %c0_i32_47 = arith.constant 0 : i32
      %229 = tpu.memref_slice %arg2[%arg0, %228, %c0_i32_46, %c0_i32_47] : memref<2x16x16x128xf32, #tpu.memory_space<any>> -> memref<1x12x16x128xf32, #tpu.memory_space<any>>
      %230 = tpu.memref_squeeze %229 : memref<1x12x16x128xf32, #tpu.memory_space<any>> -> memref<12x16x128xf32, #tpu.memory_space<any>>
      %c0_i32_48 = arith.constant 0 : i32
      %c2_i32_49 = arith.constant 2 : i32
      %c0_i32_50 = arith.constant 0 : i32
      %231 = tpu.memref_slice %arg6[%c0_i32_48, %c2_i32_49, %c0_i32_50] : memref<12x20x128xf32, #tpu.memory_space<vmem>> -> memref<12x16x128xf32, #tpu.memory_space<vmem>>
      %232 = tpu.memref_slice %arg7[%c0_i32_45] : memref<1x!tpu.dma_semaphore, #tpu.memory_space<semaphore_mem>> -> memref<1x!tpu.dma_semaphore, #tpu.memory_space<semaphore_mem>>
      %233 = tpu.memref_squeeze %232 : memref<1x!tpu.dma_semaphore, #tpu.memory_space<semaphore_mem>> -> memref<!tpu.dma_semaphore, #tpu.memory_space<semaphore_mem>>
      tpu.wait_dma2 semaphore(%233 : memref<!tpu.dma_semaphore, #tpu.memory_space<semaphore_mem>>) src(%230 : memref<12x16x128xf32, #tpu.memory_space<any>>) dst(%231 : memref<12x16x128xf32, #tpu.memory_space<vmem>>)
    } else {
    }
    %cst_23 = arith.constant 0.000000e+00 : f32
    %30 = vector.broadcast %cst_23 : f32 to vector<8x16x128xf32>
    %c0_24 = arith.constant 0 : index
    %c0_25 = arith.constant 0 : index
    %c0_26 = arith.constant 0 : index
    %31 = vector.load %arg6[%c0_24, %c0_25, %c0_26] : memref<12x20x128xf32, #tpu.memory_space<vmem>>, vector<12x16x128xf32>
    %32 = vector.extract_strided_slice %31 {offsets = [0, 0, 0], sizes = [8, 16, 128], strides = [1, 1, 1]} : vector<12x16x128xf32> to vector<8x16x128xf32>
    %33 = vector.extract_strided_slice %16 {offsets = [0, 0], sizes = [1, 128], strides = [1, 1]} : vector<25x128xf32> to vector<1x128xf32>
    %34 = vector.shape_cast %33 : vector<1x128xf32> to vector<128xf32>
    %35 = vector.shape_cast %34 : vector<128xf32> to vector<1x1x128xf32>
    %36 = vector.broadcast %35 : vector<1x1x128xf32> to vector<8x16x128xf32>
    %37 = arith.mulf %32, %36 : vector<8x16x128xf32>
    %38 = arith.addf %30, %37 : vector<8x16x128xf32>
    %39 = vector.extract_strided_slice %31 {offsets = [1, 0, 0], sizes = [8, 16, 128], strides = [1, 1, 1]} : vector<12x16x128xf32> to vector<8x16x128xf32>
    %40 = vector.extract_strided_slice %16 {offsets = [5, 0], sizes = [1, 128], strides = [1, 1]} : vector<25x128xf32> to vector<1x128xf32>
    %41 = vector.shape_cast %40 : vector<1x128xf32> to vector<128xf32>
    %42 = vector.shape_cast %41 : vector<128xf32> to vector<1x1x128xf32>
    %43 = vector.broadcast %42 : vector<1x1x128xf32> to vector<8x16x128xf32>
    %44 = arith.mulf %39, %43 : vector<8x16x128xf32>
    %45 = arith.addf %38, %44 : vector<8x16x128xf32>
    %46 = vector.extract_strided_slice %31 {offsets = [2, 0, 0], sizes = [8, 16, 128], strides = [1, 1, 1]} : vector<12x16x128xf32> to vector<8x16x128xf32>
    %47 = vector.extract_strided_slice %16 {offsets = [10, 0], sizes = [1, 128], strides = [1, 1]} : vector<25x128xf32> to vector<1x128xf32>
    %48 = vector.shape_cast %47 : vector<1x128xf32> to vector<128xf32>
    %49 = vector.shape_cast %48 : vector<128xf32> to vector<1x1x128xf32>
    %50 = vector.broadcast %49 : vector<1x1x128xf32> to vector<8x16x128xf32>
    %51 = arith.mulf %46, %50 : vector<8x16x128xf32>
    %52 = arith.addf %45, %51 : vector<8x16x128xf32>
    %53 = vector.extract_strided_slice %31 {offsets = [3, 0, 0], sizes = [8, 16, 128], strides = [1, 1, 1]} : vector<12x16x128xf32> to vector<8x16x128xf32>
    %54 = vector.extract_strided_slice %16 {offsets = [15, 0], sizes = [1, 128], strides = [1, 1]} : vector<25x128xf32> to vector<1x128xf32>
    %55 = vector.shape_cast %54 : vector<1x128xf32> to vector<128xf32>
    %56 = vector.shape_cast %55 : vector<128xf32> to vector<1x1x128xf32>
    %57 = vector.broadcast %56 : vector<1x1x128xf32> to vector<8x16x128xf32>
    %58 = arith.mulf %53, %57 : vector<8x16x128xf32>
    %59 = arith.addf %52, %58 : vector<8x16x128xf32>
    %60 = vector.extract_strided_slice %31 {offsets = [4, 0, 0], sizes = [8, 16, 128], strides = [1, 1, 1]} : vector<12x16x128xf32> to vector<8x16x128xf32>
    %61 = vector.extract_strided_slice %16 {offsets = [20, 0], sizes = [1, 128], strides = [1, 1]} : vector<25x128xf32> to vector<1x128xf32>
    %62 = vector.shape_cast %61 : vector<1x128xf32> to vector<128xf32>
    %63 = vector.shape_cast %62 : vector<128xf32> to vector<1x1x128xf32>
    %64 = vector.broadcast %63 : vector<1x1x128xf32> to vector<8x16x128xf32>
    %65 = arith.mulf %60, %64 : vector<8x16x128xf32>
    %66 = arith.addf %59, %65 : vector<8x16x128xf32>
    %c0_27 = arith.constant 0 : index
    %c1 = arith.constant 1 : index
    %c0_28 = arith.constant 0 : index
    %67 = vector.load %arg6[%c0_27, %c1, %c0_28] : memref<12x20x128xf32, #tpu.memory_space<vmem>>, vector<12x16x128xf32>
    %68 = vector.extract_strided_slice %67 {offsets = [0, 0, 0], sizes = [8, 16, 128], strides = [1, 1, 1]} : vector<12x16x128xf32> to vector<8x16x128xf32>
    %69 = vector.extract_strided_slice %16 {offsets = [1, 0], sizes = [1, 128], strides = [1, 1]} : vector<25x128xf32> to vector<1x128xf32>
    %70 = vector.shape_cast %69 : vector<1x128xf32> to vector<128xf32>
    %71 = vector.shape_cast %70 : vector<128xf32> to vector<1x1x128xf32>
    %72 = vector.broadcast %71 : vector<1x1x128xf32> to vector<8x16x128xf32>
    %73 = arith.mulf %68, %72 : vector<8x16x128xf32>
    %74 = arith.addf %66, %73 : vector<8x16x128xf32>
    %75 = vector.extract_strided_slice %67 {offsets = [1, 0, 0], sizes = [8, 16, 128], strides = [1, 1, 1]} : vector<12x16x128xf32> to vector<8x16x128xf32>
    %76 = vector.extract_strided_slice %16 {offsets = [6, 0], sizes = [1, 128], strides = [1, 1]} : vector<25x128xf32> to vector<1x128xf32>
    %77 = vector.shape_cast %76 : vector<1x128xf32> to vector<128xf32>
    %78 = vector.shape_cast %77 : vector<128xf32> to vector<1x1x128xf32>
    %79 = vector.broadcast %78 : vector<1x1x128xf32> to vector<8x16x128xf32>
    %80 = arith.mulf %75, %79 : vector<8x16x128xf32>
    %81 = arith.addf %74, %80 : vector<8x16x128xf32>
    %82 = vector.extract_strided_slice %67 {offsets = [2, 0, 0], sizes = [8, 16, 128], strides = [1, 1, 1]} : vector<12x16x128xf32> to vector<8x16x128xf32>
    %83 = vector.extract_strided_slice %16 {offsets = [11, 0], sizes = [1, 128], strides = [1, 1]} : vector<25x128xf32> to vector<1x128xf32>
    %84 = vector.shape_cast %83 : vector<1x128xf32> to vector<128xf32>
    %85 = vector.shape_cast %84 : vector<128xf32> to vector<1x1x128xf32>
    %86 = vector.broadcast %85 : vector<1x1x128xf32> to vector<8x16x128xf32>
    %87 = arith.mulf %82, %86 : vector<8x16x128xf32>
    %88 = arith.addf %81, %87 : vector<8x16x128xf32>
    %89 = vector.extract_strided_slice %67 {offsets = [3, 0, 0], sizes = [8, 16, 128], strides = [1, 1, 1]} : vector<12x16x128xf32> to vector<8x16x128xf32>
    %90 = vector.extract_strided_slice %16 {offsets = [16, 0], sizes = [1, 128], strides = [1, 1]} : vector<25x128xf32> to vector<1x128xf32>
    %91 = vector.shape_cast %90 : vector<1x128xf32> to vector<128xf32>
    %92 = vector.shape_cast %91 : vector<128xf32> to vector<1x1x128xf32>
    %93 = vector.broadcast %92 : vector<1x1x128xf32> to vector<8x16x128xf32>
    %94 = arith.mulf %89, %93 : vector<8x16x128xf32>
    %95 = arith.addf %88, %94 : vector<8x16x128xf32>
    %96 = vector.extract_strided_slice %67 {offsets = [4, 0, 0], sizes = [8, 16, 128], strides = [1, 1, 1]} : vector<12x16x128xf32> to vector<8x16x128xf32>
    %97 = vector.extract_strided_slice %16 {offsets = [21, 0], sizes = [1, 128], strides = [1, 1]} : vector<25x128xf32> to vector<1x128xf32>
    %98 = vector.shape_cast %97 : vector<1x128xf32> to vector<128xf32>
    %99 = vector.shape_cast %98 : vector<128xf32> to vector<1x1x128xf32>
    %100 = vector.broadcast %99 : vector<1x1x128xf32> to vector<8x16x128xf32>
    %101 = arith.mulf %96, %100 : vector<8x16x128xf32>
    %102 = arith.addf %95, %101 : vector<8x16x128xf32>
    %c0_29 = arith.constant 0 : index
    %c2 = arith.constant 2 : index
    %c0_30 = arith.constant 0 : index
    %103 = vector.load %arg6[%c0_29, %c2, %c0_30] : memref<12x20x128xf32, #tpu.memory_space<vmem>>, vector<12x16x128xf32>
    %104 = vector.extract_strided_slice %103 {offsets = [0, 0, 0], sizes = [8, 16, 128], strides = [1, 1, 1]} : vector<12x16x128xf32> to vector<8x16x128xf32>
    %105 = vector.extract_strided_slice %16 {offsets = [2, 0], sizes = [1, 128], strides = [1, 1]} : vector<25x128xf32> to vector<1x128xf32>
    %106 = vector.shape_cast %105 : vector<1x128xf32> to vector<128xf32>
    %107 = vector.shape_cast %106 : vector<128xf32> to vector<1x1x128xf32>
    %108 = vector.broadcast %107 : vector<1x1x128xf32> to vector<8x16x128xf32>
    %109 = arith.mulf %104, %108 : vector<8x16x128xf32>
    %110 = arith.addf %102, %109 : vector<8x16x128xf32>
    %111 = vector.extract_strided_slice %103 {offsets = [1, 0, 0], sizes = [8, 16, 128], strides = [1, 1, 1]} : vector<12x16x128xf32> to vector<8x16x128xf32>
    %112 = vector.extract_strided_slice %16 {offsets = [7, 0], sizes = [1, 128], strides = [1, 1]} : vector<25x128xf32> to vector<1x128xf32>
    %113 = vector.shape_cast %112 : vector<1x128xf32> to vector<128xf32>
    %114 = vector.shape_cast %113 : vector<128xf32> to vector<1x1x128xf32>
    %115 = vector.broadcast %114 : vector<1x1x128xf32> to vector<8x16x128xf32>
    %116 = arith.mulf %111, %115 : vector<8x16x128xf32>
    %117 = arith.addf %110, %116 : vector<8x16x128xf32>
    %118 = vector.extract_strided_slice %103 {offsets = [2, 0, 0], sizes = [8, 16, 128], strides = [1, 1, 1]} : vector<12x16x128xf32> to vector<8x16x128xf32>
    %119 = vector.extract_strided_slice %16 {offsets = [12, 0], sizes = [1, 128], strides = [1, 1]} : vector<25x128xf32> to vector<1x128xf32>
    %120 = vector.shape_cast %119 : vector<1x128xf32> to vector<128xf32>
    %121 = vector.shape_cast %120 : vector<128xf32> to vector<1x1x128xf32>
    %122 = vector.broadcast %121 : vector<1x1x128xf32> to vector<8x16x128xf32>
    %123 = arith.mulf %118, %122 : vector<8x16x128xf32>
    %124 = arith.addf %117, %123 : vector<8x16x128xf32>
    %125 = vector.extract_strided_slice %103 {offsets = [3, 0, 0], sizes = [8, 16, 128], strides = [1, 1, 1]} : vector<12x16x128xf32> to vector<8x16x128xf32>
    %126 = vector.extract_strided_slice %16 {offsets = [17, 0], sizes = [1, 128], strides = [1, 1]} : vector<25x128xf32> to vector<1x128xf32>
    %127 = vector.shape_cast %126 : vector<1x128xf32> to vector<128xf32>
    %128 = vector.shape_cast %127 : vector<128xf32> to vector<1x1x128xf32>
    %129 = vector.broadcast %128 : vector<1x1x128xf32> to vector<8x16x128xf32>
    %130 = arith.mulf %125, %129 : vector<8x16x128xf32>
    %131 = arith.addf %124, %130 : vector<8x16x128xf32>
    %132 = vector.extract_strided_slice %103 {offsets = [4, 0, 0], sizes = [8, 16, 128], strides = [1, 1, 1]} : vector<12x16x128xf32> to vector<8x16x128xf32>
    %133 = vector.extract_strided_slice %16 {offsets = [22, 0], sizes = [1, 128], strides = [1, 1]} : vector<25x128xf32> to vector<1x128xf32>
    %134 = vector.shape_cast %133 : vector<1x128xf32> to vector<128xf32>
    %135 = vector.shape_cast %134 : vector<128xf32> to vector<1x1x128xf32>
    %136 = vector.broadcast %135 : vector<1x1x128xf32> to vector<8x16x128xf32>
    %137 = arith.mulf %132, %136 : vector<8x16x128xf32>
    %138 = arith.addf %131, %137 : vector<8x16x128xf32>
    %c0_31 = arith.constant 0 : index
    %c3 = arith.constant 3 : index
    %c0_32 = arith.constant 0 : index
    %139 = vector.load %arg6[%c0_31, %c3, %c0_32] : memref<12x20x128xf32, #tpu.memory_space<vmem>>, vector<12x16x128xf32>
    %140 = vector.extract_strided_slice %139 {offsets = [0, 0, 0], sizes = [8, 16, 128], strides = [1, 1, 1]} : vector<12x16x128xf32> to vector<8x16x128xf32>
    %141 = vector.extract_strided_slice %16 {offsets = [3, 0], sizes = [1, 128], strides = [1, 1]} : vector<25x128xf32> to vector<1x128xf32>
    %142 = vector.shape_cast %141 : vector<1x128xf32> to vector<128xf32>
    %143 = vector.shape_cast %142 : vector<128xf32> to vector<1x1x128xf32>
    %144 = vector.broadcast %143 : vector<1x1x128xf32> to vector<8x16x128xf32>
    %145 = arith.mulf %140, %144 : vector<8x16x128xf32>
    %146 = arith.addf %138, %145 : vector<8x16x128xf32>
    %147 = vector.extract_strided_slice %139 {offsets = [1, 0, 0], sizes = [8, 16, 128], strides = [1, 1, 1]} : vector<12x16x128xf32> to vector<8x16x128xf32>
    %148 = vector.extract_strided_slice %16 {offsets = [8, 0], sizes = [1, 128], strides = [1, 1]} : vector<25x128xf32> to vector<1x128xf32>
    %149 = vector.shape_cast %148 : vector<1x128xf32> to vector<128xf32>
    %150 = vector.shape_cast %149 : vector<128xf32> to vector<1x1x128xf32>
    %151 = vector.broadcast %150 : vector<1x1x128xf32> to vector<8x16x128xf32>
    %152 = arith.mulf %147, %151 : vector<8x16x128xf32>
    %153 = arith.addf %146, %152 : vector<8x16x128xf32>
    %154 = vector.extract_strided_slice %139 {offsets = [2, 0, 0], sizes = [8, 16, 128], strides = [1, 1, 1]} : vector<12x16x128xf32> to vector<8x16x128xf32>
    %155 = vector.extract_strided_slice %16 {offsets = [13, 0], sizes = [1, 128], strides = [1, 1]} : vector<25x128xf32> to vector<1x128xf32>
    %156 = vector.shape_cast %155 : vector<1x128xf32> to vector<128xf32>
    %157 = vector.shape_cast %156 : vector<128xf32> to vector<1x1x128xf32>
    %158 = vector.broadcast %157 : vector<1x1x128xf32> to vector<8x16x128xf32>
    %159 = arith.mulf %154, %158 : vector<8x16x128xf32>
    %160 = arith.addf %153, %159 : vector<8x16x128xf32>
    %161 = vector.extract_strided_slice %139 {offsets = [3, 0, 0], sizes = [8, 16, 128], strides = [1, 1, 1]} : vector<12x16x128xf32> to vector<8x16x128xf32>
    %162 = vector.extract_strided_slice %16 {offsets = [18, 0], sizes = [1, 128], strides = [1, 1]} : vector<25x128xf32> to vector<1x128xf32>
    %163 = vector.shape_cast %162 : vector<1x128xf32> to vector<128xf32>
    %164 = vector.shape_cast %163 : vector<128xf32> to vector<1x1x128xf32>
    %165 = vector.broadcast %164 : vector<1x1x128xf32> to vector<8x16x128xf32>
    %166 = arith.mulf %161, %165 : vector<8x16x128xf32>
    %167 = arith.addf %160, %166 : vector<8x16x128xf32>
    %168 = vector.extract_strided_slice %139 {offsets = [4, 0, 0], sizes = [8, 16, 128], strides = [1, 1, 1]} : vector<12x16x128xf32> to vector<8x16x128xf32>
    %169 = vector.extract_strided_slice %16 {offsets = [23, 0], sizes = [1, 128], strides = [1, 1]} : vector<25x128xf32> to vector<1x128xf32>
    %170 = vector.shape_cast %169 : vector<1x128xf32> to vector<128xf32>
    %171 = vector.shape_cast %170 : vector<128xf32> to vector<1x1x128xf32>
    %172 = vector.broadcast %171 : vector<1x1x128xf32> to vector<8x16x128xf32>
    %173 = arith.mulf %168, %172 : vector<8x16x128xf32>
    %174 = arith.addf %167, %173 : vector<8x16x128xf32>
    %c0_33 = arith.constant 0 : index
    %c4 = arith.constant 4 : index
    %c0_34 = arith.constant 0 : index
    %175 = vector.load %arg6[%c0_33, %c4, %c0_34] : memref<12x20x128xf32, #tpu.memory_space<vmem>>, vector<12x16x128xf32>
    %176 = vector.extract_strided_slice %175 {offsets = [0, 0, 0], sizes = [8, 16, 128], strides = [1, 1, 1]} : vector<12x16x128xf32> to vector<8x16x128xf32>
    %177 = vector.extract_strided_slice %16 {offsets = [4, 0], sizes = [1, 128], strides = [1, 1]} : vector<25x128xf32> to vector<1x128xf32>
    %178 = vector.shape_cast %177 : vector<1x128xf32> to vector<128xf32>
    %179 = vector.shape_cast %178 : vector<128xf32> to vector<1x1x128xf32>
    %180 = vector.broadcast %179 : vector<1x1x128xf32> to vector<8x16x128xf32>
    %181 = arith.mulf %176, %180 : vector<8x16x128xf32>
    %182 = arith.addf %174, %181 : vector<8x16x128xf32>
    %183 = vector.extract_strided_slice %175 {offsets = [1, 0, 0], sizes = [8, 16, 128], strides = [1, 1, 1]} : vector<12x16x128xf32> to vector<8x16x128xf32>
    %184 = vector.extract_strided_slice %16 {offsets = [9, 0], sizes = [1, 128], strides = [1, 1]} : vector<25x128xf32> to vector<1x128xf32>
    %185 = vector.shape_cast %184 : vector<1x128xf32> to vector<128xf32>
    %186 = vector.shape_cast %185 : vector<128xf32> to vector<1x1x128xf32>
    %187 = vector.broadcast %186 : vector<1x1x128xf32> to vector<8x16x128xf32>
    %188 = arith.mulf %183, %187 : vector<8x16x128xf32>
    %189 = arith.addf %182, %188 : vector<8x16x128xf32>
    %190 = vector.extract_strided_slice %175 {offsets = [2, 0, 0], sizes = [8, 16, 128], strides = [1, 1, 1]} : vector<12x16x128xf32> to vector<8x16x128xf32>
    %191 = vector.extract_strided_slice %16 {offsets = [14, 0], sizes = [1, 128], strides = [1, 1]} : vector<25x128xf32> to vector<1x128xf32>
    %192 = vector.shape_cast %191 : vector<1x128xf32> to vector<128xf32>
    %193 = vector.shape_cast %192 : vector<128xf32> to vector<1x1x128xf32>
    %194 = vector.broadcast %193 : vector<1x1x128xf32> to vector<8x16x128xf32>
    %195 = arith.mulf %190, %194 : vector<8x16x128xf32>
    %196 = arith.addf %189, %195 : vector<8x16x128xf32>
    %197 = vector.extract_strided_slice %175 {offsets = [3, 0, 0], sizes = [8, 16, 128], strides = [1, 1, 1]} : vector<12x16x128xf32> to vector<8x16x128xf32>
    %198 = vector.extract_strided_slice %16 {offsets = [19, 0], sizes = [1, 128], strides = [1, 1]} : vector<25x128xf32> to vector<1x128xf32>
    %199 = vector.shape_cast %198 : vector<1x128xf32> to vector<128xf32>
    %200 = vector.shape_cast %199 : vector<128xf32> to vector<1x1x128xf32>
    %201 = vector.broadcast %200 : vector<1x1x128xf32> to vector<8x16x128xf32>
    %202 = arith.mulf %197, %201 : vector<8x16x128xf32>
    %203 = arith.addf %196, %202 : vector<8x16x128xf32>
    %204 = vector.extract_strided_slice %175 {offsets = [4, 0, 0], sizes = [8, 16, 128], strides = [1, 1, 1]} : vector<12x16x128xf32> to vector<8x16x128xf32>
    %205 = vector.extract_strided_slice %16 {offsets = [24, 0], sizes = [1, 128], strides = [1, 1]} : vector<25x128xf32> to vector<1x128xf32>
    %206 = vector.shape_cast %205 : vector<1x128xf32> to vector<128xf32>
    %207 = vector.shape_cast %206 : vector<128xf32> to vector<1x1x128xf32>
    %208 = vector.broadcast %207 : vector<1x1x128xf32> to vector<8x16x128xf32>
    %209 = arith.mulf %204, %208 : vector<8x16x128xf32>
    %210 = arith.addf %203, %209 : vector<8x16x128xf32>
    %211 = vector.shape_cast %18 : vector<128xf32> to vector<1x1x128xf32>
    %212 = vector.broadcast %211 : vector<1x1x128xf32> to vector<8x16x128xf32>
    %213 = arith.addf %210, %212 : vector<8x16x128xf32>
    %cst_35 = arith.constant 5.000000e-01 : f32
    %214 = vector.broadcast %cst_35 : f32 to vector<8x16x128xf32>
    %215 = arith.mulf %214, %213 : vector<8x16x128xf32>
    %cst_36 = arith.constant 0.707106769 : f32
    %216 = vector.broadcast %cst_36 : f32 to vector<8x16x128xf32>
    %217 = arith.mulf %213, %216 : vector<8x16x128xf32>
    %218 = math.erf %217 : vector<8x16x128xf32>
    %cst_37 = arith.constant 1.000000e+00 : f32
    %219 = vector.broadcast %cst_37 : f32 to vector<8x16x128xf32>
    %220 = arith.addf %219, %218 : vector<8x16x128xf32>
    %221 = arith.mulf %215, %220 : vector<8x16x128xf32>
    %c2_38 = arith.constant 2 : index
    %c2_39 = arith.constant 2 : index
    %c0_40 = arith.constant 0 : index
    %222 = vector.load %arg6[%c2_38, %c2_39, %c0_40] : memref<12x20x128xf32, #tpu.memory_space<vmem>>, vector<8x16x128xf32>
    %223 = arith.addf %221, %222 : vector<8x16x128xf32>
    %c0_41 = arith.constant 0 : index
    %c0_42 = arith.constant 0 : index
    %c0_43 = arith.constant 0 : index
    %c0_44 = arith.constant 0 : index
    %224 = vector.load %arg5[%c0_41, %c0_42, %c0_43, %c0_44] : memref<1x8x16x128xf32, #tpu.memory_space<vmem>>, vector<1x8x16x128xf32>
    %225 = vector.shape_cast %224 : vector<1x8x16x128xf32> to vector<8x16x128xf32>
    %226 = vector.shape_cast %223 : vector<8x16x128xf32> to vector<1x8x16x128xf32>
    tpu.vector_store %arg5[%c0_41, %c0_42, %c0_43, %c0_44], %226 {strides = array<i32>} : memref<1x8x16x128xf32, #tpu.memory_space<vmem>>, vector<1x8x16x128xf32>,
    return
  }
  func.func @transform_1(%arg0: i32, %arg1: i32) -> (i32, i32, i32) {
    %c0_i32 = arith.constant 0 : i32
    %c0_i32_0 = arith.constant 0 : i32
    %c0_i32_1 = arith.constant 0 : i32
    return %arg0, %c0_i32, %c0_i32_0 : i32, i32, i32
  }
  func.func @transform_2(%arg0: i32, %arg1: i32) -> (i32, i32, i32) {
    %c0_i32 = arith.constant 0 : i32
    %c0_i32_0 = arith.constant 0 : i32
    %c0_i32_1 = arith.constant 0 : i32
    return %arg0, %c0_i32, %c0_i32_0 : i32, i32, i32
  }
  func.func @transform_3(%arg0: i32, %arg1: i32) -> (i32, i32, i32, i32) {
    %c0_i32 = arith.constant 0 : i32
    %c0_i32_0 = arith.constant 0 : i32
    %c0_i32_1 = arith.constant 0 : i32
    return %arg0, %arg1, %c0_i32, %c0_i32_0 : i32, i32, i32, i32
  }
}

</mosaic_0001>

<llo_original>
// kernel: tpu_custom_call.1
$region0: #{tpu_custom_call.1}
  #allocation0 [shape = 'u32[]', space=smem, size = 0x4, offset = 0x4, fixed_abs, tag = 'smem constant byte address 0x4 - core index']
  #allocation1 [shape = 'u32[144,128]{1,0:T(1,128)}', space=vmem, size = 0x12000, scoped, tag = 'internal scratch']
  #allocation2 [shape = 'f32[12,20,128]{2,1,0:T(8,128)}', space=vmem, size = 0x24000, scoped, tag = 'scratch operand']
  #allocation3 [shape = 's32[1]{0}', space=sflag, size = 0x4, scoped, tag = 'scratch operand']
  #allocation6 [shape = 's32[]', space=sflag, size = 0x4, offset = 0, fixed_abs, tag = 'sflag constant byte address 0x0 - dummy sync flag']
  #allocation7 [shape = 's32[]', space=sflag, size = 0x4, offset = 0, fixed_abs, tag = 'sflag constant byte address 0x0 - dummy sync flag']
  #allocation8 [shape = 's32[]', space=sflag, size = 0x4, offset = 0, fixed_abs, tag = 'sflag constant byte address 0x0 - dummy sync flag']
  %s0 = inlined_call_operand.hbm [shape: f32[2,16,16,128], index: 0, kind: input, shape index: {}]
  %s1 = inlined_call_operand.vmem [shape: f32[2,25,128], index: 1, kind: input, shape index: {}]
  %s2 = inlined_call_operand.vmem [shape: f32[2,1,128], index: 2, kind: input, shape index: {}]
  %s3 = inlined_call_operand.hbm [shape: f32[2,16,16,128], index: 3, kind: output, shape index: {}]
  %s4 = sld [smem:[#allocation0]]
  $region65: #{tpu_custom_call.1} parent=0
    _
  %s6 = ssub.s32 1, %s4
  %s7 = scalar_select 0, %s6, %s4
  $region1: #{tpu_custom_call.1} parent=0
    #allocation4 [shape = 'u8[131072]{0}', space=vmem, size = 0x20000, scoped, tag = 'output window, operand 0']
    #allocation5 [shape = 's32[2]{0}', space=sflag, size = 0x8, scoped, tag = 'scoped memory for tpu_custom_call.1']
    %8 = vsyncpa [#allocation5], 0
    %s9 = scalar_lea.sflag [#allocation5], 1
    %10 = vsyncpa %s9, 0
    loop: start=0, step=1, limit=6
    $region2: #{tpu_custom_call.1} parent=1 // loop_pre_header
      _
    $region3: #{tpu_custom_call.1} parent=1 // loop_header
      %s12 = sphi 0, %s16
      %p13 = scmp.ge.s32.totalorder %s12, 6
      %s19 = sphi 0, %s31
      %s20 = sphi 0, %s27
      %s21 = sphi 0, %s19
      %s22 = sphi 0, %s20
      %s23 = sphi 0, %s21
      %s24 = sphi 0, %s22
      %s34 = sphi 0, %s36
      %s37 = sphi 0, %s34
      %s38 = sphi 0, %s37
      %s54 = sphi 0, %s38
      %s60 = sphi 0, %s62
      %s63 = sphi 0, %s60
      %s64 = sphi 0, %s63
      %s80 = sphi 0, %s64
      %s88 = sphi 0, %s90
      %s91 = sphi 0, %s88
      %s92 = sphi 0, %s91
      %s108 = sphi 0, %s92
    $region4: #{tpu_custom_call.1} parent=1 // loop_header_branch
      %15 = sbr.rel (%p13) target = $region8
    $region5: #{tpu_custom_call.1} parent=1 // loop_body
      %s17 = ssub.s32 %s12, 1
      %s18 = ssub.s32 %s12, 2
      %s25 = sadd.s32 1, %s20
      %p26 = scmp.ge.s32.totalorder %s25, 2
      %s27 = scalar_select %p26, 0, %s25
      %s28 = sadd.s32 1, %s19
      %s29 = scalar_select %p26, %s28, %s19
      %p30 = scmp.ge.s32.totalorder %s29, 2
      %s31 = scalar_select %p30, 0, %s29
      %s32 = ssub.s32 %s19, %s31
      %p33 = scmp.eq.s32.totalorder %s32, 0
      %s35 = sadd.s32 %s34, 1
      %s36 = scalar_select %p33, %s34, %s35
      %p39 = pneg %p33
      %p40 = scmp.eq.s32.totalorder %s12, 3
      %p41 = por %p39, %p40
      %p42 = scmp.ne.s32.totalorder %s34, %s37
      %p43 = scmp.eq.s32.totalorder %s12, 0
      %p44 = por %p42, %p43
      %p45 = scmp.ne.s32.totalorder %s34, %s37
      %p46 = scmp.eq.s32.totalorder %s17, 3
      %p47 = por %p45, %p46
      %p48 = scmp.ne.s32.totalorder %s37, %s38
      %p49 = scmp.eq.s32.totalorder %s17, 0
      %p50 = por %p48, %p49
      %p51 = scmp.ne.s32.totalorder %s37, %s38
      %p52 = scmp.eq.s32.totalorder %s18, 3
      %p53 = por %p51, %p52
      %p55 = scmp.ne.s32.totalorder %s38, %s54
      %p56 = scmp.eq.s32.totalorder %s18, 0
      %p57 = por %p55, %p56
      %s58 = ssub.s32 %s19, %s31
      %p59 = scmp.eq.s32.totalorder %s58, 0
      %s61 = sadd.s32 %s60, 1
      %s62 = scalar_select %p59, %s60, %s61
      %p65 = pneg %p59
      %p66 = scmp.eq.s32.totalorder %s12, 3
      %p67 = por %p65, %p66
      %p68 = scmp.ne.s32.totalorder %s60, %s63
      %p69 = scmp.eq.s32.totalorder %s12, 0
      %p70 = por %p68, %p69
      %p71 = scmp.ne.s32.totalorder %s60, %s63
      %p72 = scmp.eq.s32.totalorder %s17, 3
      %p73 = por %p71, %p72
      %p74 = scmp.ne.s32.totalorder %s63, %s64
      %p75 = scmp.eq.s32.totalorder %s17, 0
      %p76 = por %p74, %p75
      %p77 = scmp.ne.s32.totalorder %s63, %s64
      %p78 = scmp.eq.s32.totalorder %s18, 3
      %p79 = por %p77, %p78
      %p81 = scmp.ne.s32.totalorder %s64, %s80
      %p82 = scmp.eq.s32.totalorder %s18, 0
      %p83 = por %p81, %p82
      %s84 = ssub.s32 %s19, %s31
      %s85 = ssub.s32 %s20, %s27
      %s86 = sor.u32 %s84, %s85
      %p87 = scmp.eq.s32.totalorder %s86, 0
      %s89 = sadd.s32 %s88, 1
      %s90 = scalar_select %p87, %s88, %s89
      %p93 = pneg %p87
      %p94 = scmp.eq.s32.totalorder %s12, 3
      %p95 = por %p93, %p94
      %p96 = scmp.ne.s32.totalorder %s88, %s91
      %p97 = scmp.eq.s32.totalorder %s12, 0
      %p98 = por %p96, %p97
      %p99 = scmp.ne.s32.totalorder %s88, %s91
      %p100 = scmp.eq.s32.totalorder %s17, 3
      %p101 = por %p99, %p100
      %p102 = scmp.ne.s32.totalorder %s91, %s92
      %p103 = scmp.eq.s32.totalorder %s17, 0
      %p104 = por %p102, %p103
      %p105 = scmp.ne.s32.totalorder %s91, %s92
      %p106 = scmp.eq.s32.totalorder %s18, 3
      %p107 = por %p105, %p106
      %p109 = scmp.ne.s32.totalorder %s92, %s108
      %p110 = scmp.eq.s32.totalorder %s18, 0
      %p111 = por %p109, %p110
      %p112 = scmp.le.s32.totalorder 1, %s12
      %p113 = scmp.lt.s32.totalorder %s12, 5
      %p114 = pnand %p112, %p113
      %p115 = pneg %p114
      // Predicated region
      $region9: #{tpu_custom_call.1} parent=5 // pred_check
        _
      $region10: #{tpu_custom_call.1} parent=5 // pred_check_branch
        %117 = sbr.rel (%p114) target = $region12
      $region11: #{tpu_custom_call.1} parent=5 // pred_region
        %s118 = ssub.s32 %s12, 1
      $region12: #{tpu_custom_call.1} parent=5 // pred_fallthru
        _
      %p119 = scmp.lt.s32.totalorder %s12, 4
      // Predicated region
      $region13: #{tpu_custom_call.1} parent=5 // pred_check
        %p120 = pneg %p119
      $region14: #{tpu_custom_call.1} parent=5 // pred_check_branch
        %122 = sbr.rel (%p120) target = $region16
      $region15: #{tpu_custom_call.1} parent=5 // pred_region
        // Predicated region
        $region17: #{tpu_custom_call.1} parent=15 // pred_check
          %p123 = pneg %p44
        $region18: #{tpu_custom_call.1} parent=15 // pred_check_branch
          %125 = sbr.rel (%p123) target = $region20
        $region19: #{tpu_custom_call.1} parent=15 // pred_region
          %p126 = scmp.lt.s32.totalorder %s19, 1
          %s127 = scalar_select %p126, %s19, 1
          %s128 = smul.addr %s127, 4
          %s129 = smul.addr %s128, 8
          %s130 = scalar_lea.vmem %s1, %s129
        $region20: #{tpu_custom_call.1} parent=15 // pred_fallthru
          _
        // Predicated region
        $region21: #{tpu_custom_call.1} parent=15 // pred_check
          %p131 = pneg %p70
        $region22: #{tpu_custom_call.1} parent=15 // pred_check_branch
          %133 = sbr.rel (%p131) target = $region24
        $region23: #{tpu_custom_call.1} parent=15 // pred_region
          %p134 = scmp.lt.s32.totalorder %s19, 1
          %s135 = scalar_select %p134, %s19, 1
          %s136 = scalar_lea.vmem %s2, %s135
        $region24: #{tpu_custom_call.1} parent=15 // pred_fallthru
          _
      $region16: #{tpu_custom_call.1} parent=5 // pred_fallthru
        _
      %p137 = scmp.le.s32.totalorder 1, %s12
      %p138 = scmp.lt.s32.totalorder %s12, 5
      %p139 = pnand %p137, %p138
      %p140 = pneg %p139
      // Predicated region
      $region25: #{tpu_custom_call.1} parent=5 // pred_check
        _
      $region26: #{tpu_custom_call.1} parent=5 // pred_check_branch
        %142 = sbr.rel (%p139) target = $region28
      $region27: #{tpu_custom_call.1} parent=5 // pred_region
        %s143 = ssub.s32 %s12, 1
        %p144 = scmp.lt.s32.totalorder %s21, 1
        %s145 = scalar_select %p144, %s21, 1
        %s146 = smul.addr %s145, 4
        %s147 = smul.addr %s146, 8
        %s148 = scalar_lea.vmem %s1, %s147
        %p149 = pneg %p50
        %p150 = pneg %p47
        %p151 = scmp.lt.s32.totalorder %s21, 1
        %s152 = scalar_select %p151, %s21, 1
        %s153 = scalar_lea.vmem %s2, %s152
        %p154 = pneg %p76
        %p155 = pneg %p73
        %p156 = pneg %p104
        %p157 = pneg %p101
        %s158 = sand.u32 %s91, 1
        %s159 = scalar_lea.sflag [#allocation5], %s158
        %s160 = sand.u32 %s91, 1
        %s161 = smul.addr %s160, 128
        %s162 = scalar_lea.vmem [#allocation4], %s161
        %p163 = scmp.lt.s32.totalorder %s21, 1
        %s164 = scalar_select %p163, %s21, 1
        %s165 = smul.addr %s164, 4
        %s166 = smul.addr %s165, 8
        %s167 = scalar_lea.vmem %s1, %s166
        %p168 = scmp.lt.s32.totalorder %s21, 1
        %s169 = scalar_select %p168, %s21, 1
        %s170 = scalar_lea.vmem %s2, %s169
        %s171 = smul.u32 8, %s22
        %p172 = scmp.eq.s32.totalorder %s22, 0
        // Predicated region
        $region29: #{tpu_custom_call.1} parent=27 // pred_check
          %p173 = pneg %p172
        $region30: #{tpu_custom_call.1} parent=27 // pred_check_branch
          %175 = sbr.rel (%p173) target = $region32
        $region31: #{tpu_custom_call.1} parent=27 // pred_region
          %176 = vst [vmem:[#allocation2] sm:$0xff] 0.0
          %177 = vst [vmem:[#allocation2 + $0x8] sm:$0xff] 0.0
          %178 = vst [vmem:[#allocation2 + $0x10] sm:$0xf] 0.0
          %179 = vst [vmem:[#allocation2 + $0x18] sm:$0xff] 0.0
          %180 = vst [vmem:[#allocation2 + $0x20] sm:$0xff] 0.0
          %181 = vst [vmem:[#allocation2 + $0x28] sm:$0xf] 0.0
          %s182 = smul.u32 %s21, 256
          %s183 = smul.addr %s182, 16
          %s184 = scalar_lea.hbm %s0, %s183
          %s185 = scalar_lea.vmem [#allocation2], 50
          %s187 = sshll.u32 %s185, 4
          %s188 = int_to_ptr.vmem [resolvable:$true] %s187
          %190 = dma.hbm_to_vmem [thread:$0]  %s184, 2560, %s188, [#allocation3], 256, 384, 16
        $region32: #{tpu_custom_call.1} parent=27 // pred_fallthru
          _
        %p191 = scmp.eq.s32.totalorder %s22, 1
        // Predicated region
        $region33: #{tpu_custom_call.1} parent=27 // pred_check
          %p192 = pneg %p191
        $region34: #{tpu_custom_call.1} parent=27 // pred_check_branch
          %194 = sbr.rel (%p192) target = $region36
        $region35: #{tpu_custom_call.1} parent=27 // pred_region
          %s195 = scalar_lea.vmem [#allocation2], 240
          %196 = vst [vmem:[%s195] sm:$0xff] 0.0
          %197 = vst [vmem:[%s195 + $0x8] sm:$0xff] 0.0
          %198 = vst [vmem:[%s195 + $0x10] sm:$0xf] 0.0
          %199 = vst [vmem:[%s195 + $0x18] sm:$0xff] 0.0
          %200 = vst [vmem:[%s195 + $0x20] sm:$0xff] 0.0
          %201 = vst [vmem:[%s195 + $0x28] sm:$0xf] 0.0
          %s202 = smul.u32 %s21, 256
          %s203 = sadd.s32 96, %s202
          %s204 = smul.addr %s203, 16
          %s205 = scalar_lea.hbm %s0, %s204
          %s206 = scalar_lea.vmem [#allocation2], 2
          %s208 = sshll.u32 %s206, 4
          %s209 = int_to_ptr.vmem [resolvable:$true] %s208
          %211 = dma.hbm_to_vmem [thread:$0]  %s205, 2560, %s209, [#allocation3], 256, 384, 16
        $region36: #{tpu_custom_call.1} parent=27 // pred_fallthru
          _
        %p212 = scmp.gt.s32.totalorder %s22, 0
        %p213 = scmp.lt.s32.totalorder %s22, 1
        %p214 = pnand %p212, %p213
        %p215 = pneg %p214
        // Predicated region
        $region37: #{tpu_custom_call.1} parent=27 // pred_check
          _
        $region38: #{tpu_custom_call.1} parent=27 // pred_check_branch
          %217 = sbr.rel (%p214) target = $region40
        $region39: #{tpu_custom_call.1} parent=27 // pred_region
          %s218 = smul.u32 %s22, 8
          %s219 = ssub.s32 %s218, 2
          %s220 = smul.u32 %s219, 16
          %s221 = smul.u32 %s21, 256
          %s222 = sadd.s32 %s220, %s221
          %s223 = smul.addr %s222, 16
          %s224 = scalar_lea.hbm %s0, %s223
          %s225 = scalar_lea.vmem [#allocation2], 2
          %s227 = sshll.u32 %s225, 4
          %s228 = int_to_ptr.vmem [resolvable:$true] %s227
          %230 = dma.hbm_to_vmem [thread:$0]  %s224, 3072, %s228, [#allocation3], 256, 384, 16
        $region40: #{tpu_custom_call.1} parent=27 // pred_fallthru
          _
        %231 = vst [vmem:[#allocation2] sm:$0x3] 0.0
        %232 = vst [vmem:[#allocation2 + $0x18] sm:$0x3] 0.0
        %233 = vst [vmem:[#allocation2 + $0x30] sm:$0x3] 0.0
        %234 = vst [vmem:[#allocation2 + $0x48] sm:$0x3] 0.0
        %235 = vst [vmem:[#allocation2 + $0x60] sm:$0x3] 0.0
        %236 = vst [vmem:[#allocation2 + $0x78] sm:$0x3] 0.0
        %237 = vst [vmem:[#allocation2 + $0x90] sm:$0x3] 0.0
        %238 = vst [vmem:[#allocation2 + $0xa8] sm:$0x3] 0.0
        %239 = vst [vmem:[#allocation2 + $0xc0] sm:$0x3] 0.0
        %240 = vst [vmem:[#allocation2 + $0xd8] sm:$0x3] 0.0
        %241 = vst [vmem:[#allocation2 + $0xf0] sm:$0x3] 0.0
        %242 = vst [vmem:[#allocation2 + $0x108] sm:$0x3] 0.0
        %243 = vst [vmem:[#allocation2 + $0x12] sm:$0x3] 0.0
        %244 = vst [vmem:[#allocation2 + $0x2a] sm:$0x3] 0.0
        %245 = vst [vmem:[#allocation2 + $0x42] sm:$0x3] 0.0
        %246 = vst [vmem:[#allocation2 + $0x5a] sm:$0x3] 0.0
        %247 = vst [vmem:[#allocation2 + $0x72] sm:$0x3] 0.0
        %248 = vst [vmem:[#allocation2 + $0x8a] sm:$0x3] 0.0
        %249 = vst [vmem:[#allocation2 + $0xa2] sm:$0x3] 0.0
        %250 = vst [vmem:[#allocation2 + $0xba] sm:$0x3] 0.0
        %251 = vst [vmem:[#allocation2 + $0xd2] sm:$0x3] 0.0
        %252 = vst [vmem:[#allocation2 + $0xea] sm:$0x3] 0.0
        %253 = vst [vmem:[#allocation2 + $0x102] sm:$0x3] 0.0
        %254 = vst [vmem:[#allocation2 + $0x11a] sm:$0x3] 0.0
        %v255 = vld [vmem:[%s167] sm:$0xff]
        %v256 = vld [vmem:[%s167 + $0x8] sm:$0xff]
        %v257 = vld [vmem:[%s167 + $0x10] sm:$0xff]
        %v258 = vld [vmem:[%s167 + $0x18] sm:$0x1]
        %v259 = vld [vmem:[%s170] sm:$0x1]
        // Predicated region
        $region41: #{tpu_custom_call.1} parent=27 // pred_check
          %p260 = pneg %p172
        $region42: #{tpu_custom_call.1} parent=27 // pred_check_branch
          %262 = sbr.rel (%p260) target = $region44
        $region43: #{tpu_custom_call.1} parent=27 // pred_region
          %s263 = smul.u32 10, 16
          %s264 = smul.u32 %s263, 1
          %s265 = sshll.u32 %s264, 4
          %266 = dma.done [#allocation3], %s265
        $region44: #{tpu_custom_call.1} parent=27 // pred_fallthru
          _
        // Predicated region
        $region45: #{tpu_custom_call.1} parent=27 // pred_check
          %p267 = pneg %p191
        $region46: #{tpu_custom_call.1} parent=27 // pred_check_branch
          %269 = sbr.rel (%p267) target = $region48
        $region47: #{tpu_custom_call.1} parent=27 // pred_region
          %s270 = smul.u32 10, 16
          %s271 = smul.u32 %s270, 1
          %s272 = sshll.u32 %s271, 4
          %273 = dma.done [#allocation3], %s272
        $region48: #{tpu_custom_call.1} parent=27 // pred_fallthru
          _
        // Predicated region
        $region49: #{tpu_custom_call.1} parent=27 // pred_check
          _
        $region50: #{tpu_custom_call.1} parent=27 // pred_check_branch
          %275 = sbr.rel (%p214) target = $region52
        $region51: #{tpu_custom_call.1} parent=27 // pred_region
          %s276 = smul.u32 12, 16
          %s277 = smul.u32 %s276, 1
          %s278 = sshll.u32 %s277, 4
          %279 = dma.done [#allocation3], %s278
        $region52: #{tpu_custom_call.1} parent=27 // pred_fallthru
          _
        %v280 = vld [vmem:[#allocation2] sm:$0xff]
        %v281 = vld [vmem:[#allocation2 + $0x8] sm:$0xff]
        %v282 = vld [vmem:[#allocation2 + $0x18] sm:$0xff]
        %v283 = vld [vmem:[#allocation2 + $0x20] sm:$0xff]
        %v284 = vld [vmem:[#allocation2 + $0x30] sm:$0xff]
        %v285 = vld [vmem:[#allocation2 + $0x38] sm:$0xff]
        %v286 = vld [vmem:[#allocation2 + $0x48] sm:$0xff]
        %v287 = vld [vmem:[#allocation2 + $0x50] sm:$0xff]
        %v288 = vld [vmem:[#allocation2 + $0x60] sm:$0xff]
        %v289 = vld [vmem:[#allocation2 + $0x68] sm:$0xff]
        %v290 = vld [vmem:[#allocation2 + $0x78] sm:$0xff]
        %v291 = vld [vmem:[#allocation2 + $0x80] sm:$0xff]
        %v292 = vld [vmem:[#allocation2 + $0x90] sm:$0xff]
        %v293 = vld [vmem:[#allocation2 + $0x98] sm:$0xff]
        %v294 = vld [vmem:[#allocation2 + $0xa8] sm:$0xff]
        %v295 = vld [vmem:[#allocation2 + $0xb0] sm:$0xff]
        %v296 = vld [vmem:[#allocation2 + $0xc0] sm:$0xff]
        %v297 = vld [vmem:[#allocation2 + $0xc8] sm:$0xff]
        %v298 = vld [vmem:[#allocation2 + $0xd8] sm:$0xff]
        %v299 = vld [vmem:[#allocation2 + $0xe0] sm:$0xff]
        %v300 = vld [vmem:[#allocation2 + $0xf0] sm:$0xff]
        %v301 = vld [vmem:[#allocation2 + $0xf8] sm:$0xff]
        %v302 = vld [vmem:[#allocation2 + $0x108] sm:$0xff]
        %v303 = vld [vmem:[#allocation2 + $0x110] sm:$0xff]
        %v304 = vlaneseq
        %v305 = vshrl.u32 %v304, 7
        %v306 = vsub.s32 0, %v305
        %v307 = vrot.slane %v255, %v306
        %v308 = vmul.f32 %v280, %v307
        %v309 = vmul.f32 %v281, %v307
        %v310 = vmul.f32 %v282, %v307
        %v311 = vmul.f32 %v283, %v307
        %v312 = vmul.f32 %v284, %v307
        %v313 = vmul.f32 %v285, %v307
        %v314 = vmul.f32 %v286, %v307
        %v315 = vmul.f32 %v287, %v307
        %v316 = vmul.f32 %v288, %v307
        %v317 = vmul.f32 %v289, %v307
        %v318 = vmul.f32 %v290, %v307
        %v319 = vmul.f32 %v291, %v307
        %v320 = vmul.f32 %v292, %v307
        %v321 = vmul.f32 %v293, %v307
        %v322 = vmul.f32 %v294, %v307
        %v323 = vmul.f32 %v295, %v307
        %v324 = vadd.f32 %v308, 0.0
        %v325 = vadd.f32 %v309, 0.0
        %v326 = vadd.f32 %v310, 0.0
        %v327 = vadd.f32 %v311, 0.0
        %v328 = vadd.f32 %v312, 0.0
        %v329 = vadd.f32 %v313, 0.0
        %v330 = vadd.f32 %v314, 0.0
        %v331 = vadd.f32 %v315, 0.0
        %v332 = vadd.f32 %v316, 0.0
        %v333 = vadd.f32 %v317, 0.0
        %v334 = vadd.f32 %v318, 0.0
        %v335 = vadd.f32 %v319, 0.0
        %v336 = vadd.f32 %v320, 0.0
        %v337 = vadd.f32 %v321, 0.0
        %v338 = vadd.f32 %v322, 0.0
        %v339 = vadd.f32 %v323, 0.0
        %v340 = vlaneseq
        %v341 = vshrl.u32 %v340, 7
        %v342 = vsub.s32 5, %v341
        %v343 = vrot.slane %v255, %v342
        %v344 = vmul.f32 %v282, %v343
        %v345 = vmul.f32 %v283, %v343
        %v346 = vmul.f32 %v284, %v343
        %v347 = vmul.f32 %v285, %v343
        %v348 = vmul.f32 %v286, %v343
        %v349 = vmul.f32 %v287, %v343
        %v350 = vmul.f32 %v288, %v343
        %v351 = vmul.f32 %v289, %v343
        %v352 = vmul.f32 %v290, %v343
        %v353 = vmul.f32 %v291, %v343
        %v354 = vmul.f32 %v292, %v343
        %v355 = vmul.f32 %v293, %v343
        %v356 = vmul.f32 %v294, %v343
        %v357 = vmul.f32 %v295, %v343
        %v358 = vmul.f32 %v296, %v343
        %v359 = vmul.f32 %v297, %v343
        %v360 = vadd.f32 %v324, %v344
        %v361 = vadd.f32 %v325, %v345
        %v362 = vadd.f32 %v326, %v346
        %v363 = vadd.f32 %v327, %v347
        %v364 = vadd.f32 %v328, %v348
        %v365 = vadd.f32 %v329, %v349
        %v366 = vadd.f32 %v330, %v350
        %v367 = vadd.f32 %v331, %v351
        %v368 = vadd.f32 %v332, %v352
        %v369 = vadd.f32 %v333, %v353
        %v370 = vadd.f32 %v334, %v354
        %v371 = vadd.f32 %v335, %v355
        %v372 = vadd.f32 %v336, %v356
        %v373 = vadd.f32 %v337, %v357
        %v374 = vadd.f32 %v338, %v358
        %v375 = vadd.f32 %v339, %v359
        %v376 = vlaneseq
        %v377 = vshrl.u32 %v376, 7
        %v378 = vsub.s32 2, %v377
        %v379 = vrot.slane %v256, %v378
        %v380 = vmul.f32 %v284, %v379
        %v381 = vmul.f32 %v285, %v379
        %v382 = vmul.f32 %v286, %v379
        %v383 = vmul.f32 %v287, %v379
        %v384 = vmul.f32 %v288, %v379
        %v385 = vmul.f32 %v289, %v379
        %v386 = vmul.f32 %v290, %v379
        %v387 = vmul.f32 %v291, %v379
        %v388 = vmul.f32 %v292, %v379
        %v389 = vmul.f32 %v293, %v379
        %v390 = vmul.f32 %v294, %v379
        %v391 = vmul.f32 %v295, %v379
        %v392 = vmul.f32 %v296, %v379
        %v393 = vmul.f32 %v297, %v379
        %v394 = vmul.f32 %v298, %v379
        %v395 = vmul.f32 %v299, %v379
        %v396 = vadd.f32 %v360, %v380
        %v397 = vadd.f32 %v361, %v381
        %v398 = vadd.f32 %v362, %v382
        %v399 = vadd.f32 %v363, %v383
        %v400 = vadd.f32 %v364, %v384
        %v401 = vadd.f32 %v365, %v385
        %v402 = vadd.f32 %v366, %v386
        %v403 = vadd.f32 %v367, %v387
        %v404 = vadd.f32 %v368, %v388
        %v405 = vadd.f32 %v369, %v389
        %v406 = vadd.f32 %v370, %v390
        %v407 = vadd.f32 %v371, %v391
        %v408 = vadd.f32 %v372, %v392
        %v409 = vadd.f32 %v373, %v393
        %v410 = vadd.f32 %v374, %v394
        %v411 = vadd.f32 %v375, %v395
        %v412 = vlaneseq
        %v413 = vshrl.u32 %v412, 7
        %v414 = vsub.s32 7, %v413
        %v415 = vrot.slane %v256, %v414
        %v416 = vmul.f32 %v286, %v415
        %v417 = vmul.f32 %v287, %v415
        %v418 = vmul.f32 %v288, %v415
        %v419 = vmul.f32 %v289, %v415
        %v420 = vmul.f32 %v290, %v415
        %v421 = vmul.f32 %v291, %v415
        %v422 = vmul.f32 %v292, %v415
        %v423 = vmul.f32 %v293, %v415
        %v424 = vmul.f32 %v294, %v415
        %v425 = vmul.f32 %v295, %v415
        %v426 = vmul.f32 %v296, %v415
        %v427 = vmul.f32 %v297, %v415
        %v428 = vmul.f32 %v298, %v415
        %v429 = vmul.f32 %v299, %v415
        %v430 = vmul.f32 %v300, %v415
        %v431 = vmul.f32 %v301, %v415
        %v432 = vadd.f32 %v396, %v416
        %v433 = vadd.f32 %v397, %v417
        %v434 = vadd.f32 %v398, %v418
        %v435 = vadd.f32 %v399, %v419
        %v436 = vadd.f32 %v400, %v420
        %v437 = vadd.f32 %v401, %v421
        %v438 = vadd.f32 %v402, %v422
        %v439 = vadd.f32 %v403, %v423
        %v440 = vadd.f32 %v404, %v424
        %v441 = vadd.f32 %v405, %v425
        %v442 = vadd.f32 %v406, %v426
        %v443 = vadd.f32 %v407, %v427
        %v444 = vadd.f32 %v408, %v428
        %v445 = vadd.f32 %v409, %v429
        %v446 = vadd.f32 %v410, %v430
        %v447 = vadd.f32 %v411, %v431
        %v448 = vlaneseq
        %v449 = vshrl.u32 %v448, 7
        %v450 = vsub.s32 4, %v449
        %v451 = vrot.slane %v257, %v450
        %v452 = vmul.f32 %v288, %v451
        %v453 = vmul.f32 %v289, %v451
        %v454 = vmul.f32 %v290, %v451
        %v455 = vmul.f32 %v291, %v451
        %v456 = vmul.f32 %v292, %v451
        %v457 = vmul.f32 %v293, %v451
        %v458 = vmul.f32 %v294, %v451
        %v459 = vmul.f32 %v295, %v451
        %v460 = vmul.f32 %v296, %v451
        %v461 = vmul.f32 %v297, %v451
        %v462 = vmul.f32 %v298, %v451
        %v463 = vmul.f32 %v299, %v451
        %v464 = vmul.f32 %v300, %v451
        %v465 = vmul.f32 %v301, %v451
        %v466 = vmul.f32 %v302, %v451
        %v467 = vmul.f32 %v303, %v451
        %v468 = vadd.f32 %v432, %v452
        %v469 = vadd.f32 %v433, %v453
        %v470 = vadd.f32 %v434, %v454
        %v471 = vadd.f32 %v435, %v455
        %v472 = vadd.f32 %v436, %v456
        %v473 = vadd.f32 %v437, %v457
        %v474 = vadd.f32 %v438, %v458
        %v475 = vadd.f32 %v439, %v459
        %v476 = vadd.f32 %v440, %v460
        %v477 = vadd.f32 %v441, %v461
        %v478 = vadd.f32 %v442, %v462
        %v479 = vadd.f32 %v443, %v463
        %v480 = vadd.f32 %v444, %v464
        %v481 = vadd.f32 %v445, %v465
        %v482 = vadd.f32 %v446, %v466
        %v483 = vadd.f32 %v447, %v467
        %v484 = vld [vmem:[#allocation2 + $0x1] sm:$0xff]
        %v485 = vld [vmem:[#allocation2 + $0x9] sm:$0xff]
        %v486 = vld [vmem:[#allocation2 + $0x19] sm:$0xff]
        %v487 = vld [vmem:[#allocation2 + $0x21] sm:$0xff]
        %v488 = vld [vmem:[#allocation2 + $0x31] sm:$0xff]
        %v489 = vld [vmem:[#allocation2 + $0x39] sm:$0xff]
        %v490 = vld [vmem:[#allocation2 + $0x49] sm:$0xff]
        %v491 = vld [vmem:[#allocation2 + $0x51] sm:$0xff]
        %v492 = vld [vmem:[#allocation2 + $0x61] sm:$0xff]
        %v493 = vld [vmem:[#allocation2 + $0x69] sm:$0xff]
        %v494 = vld [vmem:[#allocation2 + $0x79] sm:$0xff]
        %v495 = vld [vmem:[#allocation2 + $0x81] sm:$0xff]
        %v496 = vld [vmem:[#allocation2 + $0x91] sm:$0xff]
        %v497 = vld [vmem:[#allocation2 + $0x99] sm:$0xff]
        %v498 = vld [vmem:[#allocation2 + $0xa9] sm:$0xff]
        %v499 = vld [vmem:[#allocation2 + $0xb1] sm:$0xff]
        %v500 = vld [vmem:[#allocation2 + $0xc1] sm:$0xff]
        %v501 = vld [vmem:[#allocation2 + $0xc9] sm:$0xff]
        %v502 = vld [vmem:[#allocation2 + $0xd9] sm:$0xff]
        %v503 = vld [vmem:[#allocation2 + $0xe1] sm:$0xff]
        %v504 = vld [vmem:[#allocation2 + $0xf1] sm:$0xff]
        %v505 = vld [vmem:[#allocation2 + $0xf9] sm:$0xff]
        %v506 = vld [vmem:[#allocation2 + $0x109] sm:$0xff]
        %v507 = vld [vmem:[#allocation2 + $0x111] sm:$0xff]
        %v508 = vlaneseq
        %v509 = vshrl.u32 %v508, 7
        %v510 = vsub.s32 1, %v509
        %v511 = vrot.slane %v255, %v510
        %v512 = vmul.f32 %v484, %v511
        %v513 = vmul.f32 %v485, %v511
        %v514 = vmul.f32 %v486, %v511
        %v515 = vmul.f32 %v487, %v511
        %v516 = vmul.f32 %v488, %v511
        %v517 = vmul.f32 %v489, %v511
        %v518 = vmul.f32 %v490, %v511
        %v519 = vmul.f32 %v491, %v511
        %v520 = vmul.f32 %v492, %v511
        %v521 = vmul.f32 %v493, %v511
        %v522 = vmul.f32 %v494, %v511
        %v523 = vmul.f32 %v495, %v511
        %v524 = vmul.f32 %v496, %v511
        %v525 = vmul.f32 %v497, %v511
        %v526 = vmul.f32 %v498, %v511
        %v527 = vmul.f32 %v499, %v511
        %v528 = vadd.f32 %v468, %v512
        %v529 = vadd.f32 %v469, %v513
        %v530 = vadd.f32 %v470, %v514
        %v531 = vadd.f32 %v471, %v515
        %v532 = vadd.f32 %v472, %v516
        %v533 = vadd.f32 %v473, %v517
        %v534 = vadd.f32 %v474, %v518
        %v535 = vadd.f32 %v475, %v519
        %v536 = vadd.f32 %v476, %v520
        %v537 = vadd.f32 %v477, %v521
        %v538 = vadd.f32 %v478, %v522
        %v539 = vadd.f32 %v479, %v523
        %v540 = vadd.f32 %v480, %v524
        %v541 = vadd.f32 %v481, %v525
        %v542 = vadd.f32 %v482, %v526
        %v543 = vadd.f32 %v483, %v527
        %v544 = vlaneseq
        %v545 = vshrl.u32 %v544, 7
        %v546 = vsub.s32 6, %v545
        %v547 = vrot.slane %v255, %v546
        %v548 = vmul.f32 %v486, %v547
        %v549 = vmul.f32 %v487, %v547
        %v550 = vmul.f32 %v488, %v547
        %v551 = vmul.f32 %v489, %v547
        %v552 = vmul.f32 %v490, %v547
        %v553 = vmul.f32 %v491, %v547
        %v554 = vmul.f32 %v492, %v547
        %v555 = vmul.f32 %v493, %v547
        %v556 = vmul.f32 %v494, %v547
        %v557 = vmul.f32 %v495, %v547
        %v558 = vmul.f32 %v496, %v547
        %v559 = vmul.f32 %v497, %v547
        %v560 = vmul.f32 %v498, %v547
        %v561 = vmul.f32 %v499, %v547
        %v562 = vmul.f32 %v500, %v547
        %v563 = vmul.f32 %v501, %v547
        %v564 = vadd.f32 %v528, %v548
        %v565 = vadd.f32 %v529, %v549
        %v566 = vadd.f32 %v530, %v550
        %v567 = vadd.f32 %v531, %v551
        %v568 = vadd.f32 %v532, %v552
        %v569 = vadd.f32 %v533, %v553
        %v570 = vadd.f32 %v534, %v554
        %v571 = vadd.f32 %v535, %v555
        %v572 = vadd.f32 %v536, %v556
        %v573 = vadd.f32 %v537, %v557
        %v574 = vadd.f32 %v538, %v558
        %v575 = vadd.f32 %v539, %v559
        %v576 = vadd.f32 %v540, %v560
        %v577 = vadd.f32 %v541, %v561
        %v578 = vadd.f32 %v542, %v562
        %v579 = vadd.f32 %v543, %v563
        %v580 = vlaneseq
        %v581 = vshrl.u32 %v580, 7
        %v582 = vsub.s32 3, %v581
        %v583 = vrot.slane %v256, %v582
        %v584 = vmul.f32 %v488, %v583
        %v585 = vmul.f32 %v489, %v583
        %v586 = vmul.f32 %v490, %v583
        %v587 = vmul.f32 %v491, %v583
        %v588 = vmul.f32 %v492, %v583
        %v589 = vmul.f32 %v493, %v583
        %v590 = vmul.f32 %v494, %v583
        %v591 = vmul.f32 %v495, %v583
        %v592 = vmul.f32 %v496, %v583
        %v593 = vmul.f32 %v497, %v583
        %v594 = vmul.f32 %v498, %v583
        %v595 = vmul.f32 %v499, %v583
        %v596 = vmul.f32 %v500, %v583
        %v597 = vmul.f32 %v501, %v583
        %v598 = vmul.f32 %v502, %v583
        %v599 = vmul.f32 %v503, %v583
        %v600 = vadd.f32 %v564, %v584
        %v601 = vadd.f32 %v565, %v585
        %v602 = vadd.f32 %v566, %v586
        %v603 = vadd.f32 %v567, %v587
        %v604 = vadd.f32 %v568, %v588
        %v605 = vadd.f32 %v569, %v589
        %v606 = vadd.f32 %v570, %v590
        %v607 = vadd.f32 %v571, %v591
        %v608 = vadd.f32 %v572, %v592
        %v609 = vadd.f32 %v573, %v593
        %v610 = vadd.f32 %v574, %v594
        %v611 = vadd.f32 %v575, %v595
        %v612 = vadd.f32 %v576, %v596
        %v613 = vadd.f32 %v577, %v597
        %v614 = vadd.f32 %v578, %v598
        %v615 = vadd.f32 %v579, %v599
        %v616 = vlaneseq
        %v617 = vshrl.u32 %v616, 7
        %v618 = vsub.s32 0, %v617
        %v619 = vrot.slane %v257, %v618
        %v620 = vmul.f32 %v490, %v619
        %v621 = vmul.f32 %v491, %v619
        %v622 = vmul.f32 %v492, %v619
        %v623 = vmul.f32 %v493, %v619
        %v624 = vmul.f32 %v494, %v619
        %v625 = vmul.f32 %v495, %v619
        %v626 = vmul.f32 %v496, %v619
        %v627 = vmul.f32 %v497, %v619
        %v628 = vmul.f32 %v498, %v619
        %v629 = vmul.f32 %v499, %v619
        %v630 = vmul.f32 %v500, %v619
        %v631 = vmul.f32 %v501, %v619
        %v632 = vmul.f32 %v502, %v619
        %v633 = vmul.f32 %v503, %v619
        %v634 = vmul.f32 %v504, %v619
        %v635 = vmul.f32 %v505, %v619
        %v636 = vadd.f32 %v600, %v620
        %v637 = vadd.f32 %v601, %v621
        %v638 = vadd.f32 %v602, %v622
        %v639 = vadd.f32 %v603, %v623
        %v640 = vadd.f32 %v604, %v624
        %v641 = vadd.f32 %v605, %v625
        %v642 = vadd.f32 %v606, %v626
        %v643 = vadd.f32 %v607, %v627
        %v644 = vadd.f32 %v608, %v628
        %v645 = vadd.f32 %v609, %v629
        %v646 = vadd.f32 %v610, %v630
        %v647 = vadd.f32 %v611, %v631
        %v648 = vadd.f32 %v612, %v632
        %v649 = vadd.f32 %v613, %v633
        %v650 = vadd.f32 %v614, %v634
        %v651 = vadd.f32 %v615, %v635
        %v652 = vlaneseq
        %v653 = vshrl.u32 %v652, 7
        %v654 = vsub.s32 5, %v653
        %v655 = vrot.slane %v257, %v654
        %v656 = vmul.f32 %v492, %v655
        %v657 = vmul.f32 %v493, %v655
        %v658 = vmul.f32 %v494, %v655
        %v659 = vmul.f32 %v495, %v655
        %v660 = vmul.f32 %v496, %v655
        %v661 = vmul.f32 %v497, %v655
        %v662 = vmul.f32 %v498, %v655
        %v663 = vmul.f32 %v499, %v655
        %v664 = vmul.f32 %v500, %v655
        %v665 = vmul.f32 %v501, %v655
        %v666 = vmul.f32 %v502, %v655
        %v667 = vmul.f32 %v503, %v655
        %v668 = vmul.f32 %v504, %v655
        %v669 = vmul.f32 %v505, %v655
        %v670 = vmul.f32 %v506, %v655
        %v671 = vmul.f32 %v507, %v655
        %v672 = vadd.f32 %v636, %v656
        %v673 = vadd.f32 %v637, %v657
        %v674 = vadd.f32 %v638, %v658
        %v675 = vadd.f32 %v639, %v659
        %v676 = vadd.f32 %v640, %v660
        %v677 = vadd.f32 %v641, %v661
        %v678 = vadd.f32 %v642, %v662
        %v679 = vadd.f32 %v643, %v663
        %v680 = vadd.f32 %v644, %v664
        %v681 = vadd.f32 %v645, %v665
        %v682 = vadd.f32 %v646, %v666
        %v683 = vadd.f32 %v647, %v667
        %v684 = vadd.f32 %v648, %v668
        %v685 = vadd.f32 %v649, %v669
        %v686 = vadd.f32 %v650, %v670
        %v687 = vadd.f32 %v651, %v671
        %v688 = vld [vmem:[#allocation2 + $0x2] sm:$0xff]
        %v689 = vld [vmem:[#allocation2 + $0xa] sm:$0xff]
        %v690 = vld [vmem:[#allocation2 + $0x1a] sm:$0xff]
        %v691 = vld [vmem:[#allocation2 + $0x22] sm:$0xff]
        %v692 = vld [vmem:[#allocation2 + $0x32] sm:$0xff]
        %v693 = vld [vmem:[#allocation2 + $0x3a] sm:$0xff]
        %v694 = vld [vmem:[#allocation2 + $0x4a] sm:$0xff]
        %v695 = vld [vmem:[#allocation2 + $0x52] sm:$0xff]
        %v696 = vld [vmem:[#allocation2 + $0x62] sm:$0xff]
        %v697 = vld [vmem:[#allocation2 + $0x6a] sm:$0xff]
        %v698 = vld [vmem:[#allocation2 + $0x7a] sm:$0xff]
        %v699 = vld [vmem:[#allocation2 + $0x82] sm:$0xff]
        %v700 = vld [vmem:[#allocation2 + $0x92] sm:$0xff]
        %v701 = vld [vmem:[#allocation2 + $0x9a] sm:$0xff]
        %v702 = vld [vmem:[#allocation2 + $0xaa] sm:$0xff]
        %v703 = vld [vmem:[#allocation2 + $0xb2] sm:$0xff]
        %v704 = vld [vmem:[#allocation2 + $0xc2] sm:$0xff]
        %v705 = vld [vmem:[#allocation2 + $0xca] sm:$0xff]
        %v706 = vld [vmem:[#allocation2 + $0xda] sm:$0xff]
        %v707 = vld [vmem:[#allocation2 + $0xe2] sm:$0xff]
        %v708 = vld [vmem:[#allocation2 + $0xf2] sm:$0xff]
        %v709 = vld [vmem:[#allocation2 + $0xfa] sm:$0xff]
        %v710 = vld [vmem:[#allocation2 + $0x10a] sm:$0xff]
        %v711 = vld [vmem:[#allocation2 + $0x112] sm:$0xff]
        %v712 = vlaneseq
        %v713 = vshrl.u32 %v712, 7
        %v714 = vsub.s32 2, %v713
        %v715 = vrot.slane %v255, %v714
        %v716 = vmul.f32 %v688, %v715
        %v717 = vmul.f32 %v689, %v715
        %v718 = vmul.f32 %v690, %v715
        %v719 = vmul.f32 %v691, %v715
        %v720 = vmul.f32 %v692, %v715
        %v721 = vmul.f32 %v693, %v715
        %v722 = vmul.f32 %v694, %v715
        %v723 = vmul.f32 %v695, %v715
        %v724 = vmul.f32 %v696, %v715
        %v725 = vmul.f32 %v697, %v715
        %v726 = vmul.f32 %v698, %v715
        %v727 = vmul.f32 %v699, %v715
        %v728 = vmul.f32 %v700, %v715
        %v729 = vmul.f32 %v701, %v715
        %v730 = vmul.f32 %v702, %v715
        %v731 = vmul.f32 %v703, %v715
        %v732 = vadd.f32 %v672, %v716
        %v733 = vadd.f32 %v673, %v717
        %v734 = vadd.f32 %v674, %v718
        %v735 = vadd.f32 %v675, %v719
        %v736 = vadd.f32 %v676, %v720
        %v737 = vadd.f32 %v677, %v721
        %v738 = vadd.f32 %v678, %v722
        %v739 = vadd.f32 %v679, %v723
        %v740 = vadd.f32 %v680, %v724
        %v741 = vadd.f32 %v681, %v725
        %v742 = vadd.f32 %v682, %v726
        %v743 = vadd.f32 %v683, %v727
        %v744 = vadd.f32 %v684, %v728
        %v745 = vadd.f32 %v685, %v729
        %v746 = vadd.f32 %v686, %v730
        %v747 = vadd.f32 %v687, %v731
        %v748 = vlaneseq
        %v749 = vshrl.u32 %v748, 7
        %v750 = vsub.s32 7, %v749
        %v751 = vrot.slane %v255, %v750
        %v752 = vmul.f32 %v690, %v751
        %v753 = vmul.f32 %v691, %v751
        %v754 = vmul.f32 %v692, %v751
        %v755 = vmul.f32 %v693, %v751
        %v756 = vmul.f32 %v694, %v751
        %v757 = vmul.f32 %v695, %v751
        %v758 = vmul.f32 %v696, %v751
        %v759 = vmul.f32 %v697, %v751
        %v760 = vmul.f32 %v698, %v751
        %v761 = vmul.f32 %v699, %v751
        %v762 = vmul.f32 %v700, %v751
        %v763 = vmul.f32 %v701, %v751
        %v764 = vmul.f32 %v702, %v751
        %v765 = vmul.f32 %v703, %v751
        %v766 = vmul.f32 %v704, %v751
        %v767 = vmul.f32 %v705, %v751
        %v768 = vadd.f32 %v732, %v752
        %v769 = vadd.f32 %v733, %v753
        %v770 = vadd.f32 %v734, %v754
        %v771 = vadd.f32 %v735, %v755
        %v772 = vadd.f32 %v736, %v756
        %v773 = vadd.f32 %v737, %v757
        %v774 = vadd.f32 %v738, %v758
        %v775 = vadd.f32 %v739, %v759
        %v776 = vadd.f32 %v740, %v760
        %v777 = vadd.f32 %v741, %v761
        %v778 = vadd.f32 %v742, %v762
        %v779 = vadd.f32 %v743, %v763
        %v780 = vadd.f32 %v744, %v764
        %v781 = vadd.f32 %v745, %v765
        %v782 = vadd.f32 %v746, %v766
        %v783 = vadd.f32 %v747, %v767
        %v784 = vlaneseq
        %v785 = vshrl.u32 %v784, 7
        %v786 = vsub.s32 4, %v785
        %v787 = vrot.slane %v256, %v786
        %v788 = vmul.f32 %v692, %v787
        %v789 = vmul.f32 %v693, %v787
        %v790 = vmul.f32 %v694, %v787
        %v791 = vmul.f32 %v695, %v787
        %v792 = vmul.f32 %v696, %v787
        %v793 = vmul.f32 %v697, %v787
        %v794 = vmul.f32 %v698, %v787
        %v795 = vmul.f32 %v699, %v787
        %v796 = vmul.f32 %v700, %v787
        %v797 = vmul.f32 %v701, %v787
        %v798 = vmul.f32 %v702, %v787
        %v799 = vmul.f32 %v703, %v787
        %v800 = vmul.f32 %v704, %v787
        %v801 = vmul.f32 %v705, %v787
        %v802 = vmul.f32 %v706, %v787
        %v803 = vmul.f32 %v707, %v787
        %v804 = vadd.f32 %v768, %v788
        %v805 = vadd.f32 %v769, %v789
        %v806 = vadd.f32 %v770, %v790
        %v807 = vadd.f32 %v771, %v791
        %v808 = vadd.f32 %v772, %v792
        %v809 = vadd.f32 %v773, %v793
        %v810 = vadd.f32 %v774, %v794
        %v811 = vadd.f32 %v775, %v795
        %v812 = vadd.f32 %v776, %v796
        %v813 = vadd.f32 %v777, %v797
        %v814 = vadd.f32 %v778, %v798
        %v815 = vadd.f32 %v779, %v799
        %v816 = vadd.f32 %v780, %v800
        %v817 = vadd.f32 %v781, %v801
        %v818 = vadd.f32 %v782, %v802
        %v819 = vadd.f32 %v783, %v803
        %v820 = vlaneseq
        %v821 = vshrl.u32 %v820, 7
        %v822 = vsub.s32 1, %v821
        %v823 = vrot.slane %v257, %v822
        %v824 = vmul.f32 %v694, %v823
        %v825 = vmul.f32 %v695, %v823
        %v826 = vmul.f32 %v696, %v823
        %v827 = vmul.f32 %v697, %v823
        %v828 = vmul.f32 %v698, %v823
        %v829 = vmul.f32 %v699, %v823
        %v830 = vmul.f32 %v700, %v823
        %v831 = vmul.f32 %v701, %v823
        %v832 = vmul.f32 %v702, %v823
        %v833 = vmul.f32 %v703, %v823
        %v834 = vmul.f32 %v704, %v823
        %v835 = vmul.f32 %v705, %v823
        %v836 = vmul.f32 %v706, %v823
        %v837 = vmul.f32 %v707, %v823
        %v838 = vmul.f32 %v708, %v823
        %v839 = vmul.f32 %v709, %v823
        %v840 = vadd.f32 %v804, %v824
        %v841 = vadd.f32 %v805, %v825
        %v842 = vadd.f32 %v806, %v826
        %v843 = vadd.f32 %v807, %v827
        %v844 = vadd.f32 %v808, %v828
        %v845 = vadd.f32 %v809, %v829
        %v846 = vadd.f32 %v810, %v830
        %v847 = vadd.f32 %v811, %v831
        %v848 = vadd.f32 %v812, %v832
        %v849 = vadd.f32 %v813, %v833
        %v850 = vadd.f32 %v814, %v834
        %v851 = vadd.f32 %v815, %v835
        %v852 = vadd.f32 %v816, %v836
        %v853 = vadd.f32 %v817, %v837
        %v854 = vadd.f32 %v818, %v838
        %v855 = vadd.f32 %v819, %v839
        %v856 = vlaneseq
        %v857 = vshrl.u32 %v856, 7
        %v858 = vsub.s32 6, %v857
        %v859 = vrot.slane %v257, %v858
        %v860 = vmul.f32 %v696, %v859
        %v861 = vmul.f32 %v697, %v859
        %v862 = vmul.f32 %v698, %v859
        %v863 = vmul.f32 %v699, %v859
        %v864 = vmul.f32 %v700, %v859
        %v865 = vmul.f32 %v701, %v859
        %v866 = vmul.f32 %v702, %v859
        %v867 = vmul.f32 %v703, %v859
        %v868 = vmul.f32 %v704, %v859
        %v869 = vmul.f32 %v705, %v859
        %v870 = vmul.f32 %v706, %v859
        %v871 = vmul.f32 %v707, %v859
        %v872 = vmul.f32 %v708, %v859
        %v873 = vmul.f32 %v709, %v859
        %v874 = vmul.f32 %v710, %v859
        %v875 = vmul.f32 %v711, %v859
        %v876 = vadd.f32 %v840, %v860
        %v877 = vadd.f32 %v841, %v861
        %v878 = vadd.f32 %v842, %v862
        %v879 = vadd.f32 %v843, %v863
        %v880 = vadd.f32 %v844, %v864
        %v881 = vadd.f32 %v845, %v865
        %v882 = vadd.f32 %v846, %v866
        %v883 = vadd.f32 %v847, %v867
        %v884 = vadd.f32 %v848, %v868
        %v885 = vadd.f32 %v849, %v869
        %v886 = vadd.f32 %v850, %v870
        %v887 = vadd.f32 %v851, %v871
        %v888 = vadd.f32 %v852, %v872
        %v889 = vadd.f32 %v853, %v873
        %v890 = vadd.f32 %v854, %v874
        %v891 = vadd.f32 %v855, %v875
        %v892 = vld [vmem:[#allocation2 + $0x3] sm:$0xff]
        %v893 = vld [vmem:[#allocation2 + $0xb] sm:$0xff]
        %v894 = vld [vmem:[#allocation2 + $0x1b] sm:$0xff]
        %v895 = vld [vmem:[#allocation2 + $0x23] sm:$0xff]
        %v896 = vld [vmem:[#allocation2 + $0x33] sm:$0xff]
        %v897 = vld [vmem:[#allocation2 + $0x3b] sm:$0xff]
        %v898 = vld [vmem:[#allocation2 + $0x4b] sm:$0xff]
        %v899 = vld [vmem:[#allocation2 + $0x53] sm:$0xff]
        %v900 = vld [vmem:[#allocation2 + $0x63] sm:$0xff]
        %v901 = vld [vmem:[#allocation2 + $0x6b] sm:$0xff]
        %v902 = vld [vmem:[#allocation2 + $0x7b] sm:$0xff]
        %v903 = vld [vmem:[#allocation2 + $0x83] sm:$0xff]
        %v904 = vld [vmem:[#allocation2 + $0x93] sm:$0xff]
        %v905 = vld [vmem:[#allocation2 + $0x9b] sm:$0xff]
        %v906 = vld [vmem:[#allocation2 + $0xab] sm:$0xff]
        %v907 = vld [vmem:[#allocation2 + $0xb3] sm:$0xff]
        %v908 = vld [vmem:[#allocation2 + $0xc3] sm:$0xff]
        %v909 = vld [vmem:[#allocation2 + $0xcb] sm:$0xff]
        %v910 = vld [vmem:[#allocation2 + $0xdb] sm:$0xff]
        %v911 = vld [vmem:[#allocation2 + $0xe3] sm:$0xff]
        %v912 = vld [vmem:[#allocation2 + $0xf3] sm:$0xff]
        %v913 = vld [vmem:[#allocation2 + $0xfb] sm:$0xff]
        %v914 = vld [vmem:[#allocation2 + $0x10b] sm:$0xff]
        %v915 = vld [vmem:[#allocation2 + $0x113] sm:$0xff]
        %v916 = vlaneseq
        %v917 = vshrl.u32 %v916, 7
        %v918 = vsub.s32 3, %v917
        %v919 = vrot.slane %v255, %v918
        %v920 = vmul.f32 %v892, %v919
        %v921 = vmul.f32 %v893, %v919
        %v922 = vmul.f32 %v894, %v919
        %v923 = vmul.f32 %v895, %v919
        %v924 = vmul.f32 %v896, %v919
        %v925 = vmul.f32 %v897, %v919
        %v926 = vmul.f32 %v898, %v919
        %v927 = vmul.f32 %v899, %v919
        %v928 = vmul.f32 %v900, %v919
        %v929 = vmul.f32 %v901, %v919
        %v930 = vmul.f32 %v902, %v919
        %v931 = vmul.f32 %v903, %v919
        %v932 = vmul.f32 %v904, %v919
        %v933 = vmul.f32 %v905, %v919
        %v934 = vmul.f32 %v906, %v919
        %v935 = vmul.f32 %v907, %v919
        %v936 = vadd.f32 %v876, %v920
        %v937 = vadd.f32 %v877, %v921
        %v938 = vadd.f32 %v878, %v922
        %v939 = vadd.f32 %v879, %v923
        %v940 = vadd.f32 %v880, %v924
        %v941 = vadd.f32 %v881, %v925
        %v942 = vadd.f32 %v882, %v926
        %v943 = vadd.f32 %v883, %v927
        %v944 = vadd.f32 %v884, %v928
        %v945 = vadd.f32 %v885, %v929
        %v946 = vadd.f32 %v886, %v930
        %v947 = vadd.f32 %v887, %v931
        %v948 = vadd.f32 %v888, %v932
        %v949 = vadd.f32 %v889, %v933
        %v950 = vadd.f32 %v890, %v934
        %v951 = vadd.f32 %v891, %v935
        %v952 = vlaneseq
        %v953 = vshrl.u32 %v952, 7
        %v954 = vsub.s32 0, %v953
        %v955 = vrot.slane %v256, %v954
        %v956 = vmul.f32 %v894, %v955
        %v957 = vmul.f32 %v895, %v955
        %v958 = vmul.f32 %v896, %v955
        %v959 = vmul.f32 %v897, %v955
        %v960 = vmul.f32 %v898, %v955
        %v961 = vmul.f32 %v899, %v955
        %v962 = vmul.f32 %v900, %v955
        %v963 = vmul.f32 %v901, %v955
        %v964 = vmul.f32 %v902, %v955
        %v965 = vmul.f32 %v903, %v955
        %v966 = vmul.f32 %v904, %v955
        %v967 = vmul.f32 %v905, %v955
        %v968 = vmul.f32 %v906, %v955
        %v969 = vmul.f32 %v907, %v955
        %v970 = vmul.f32 %v908, %v955
        %v971 = vmul.f32 %v909, %v955
        %v972 = vadd.f32 %v936, %v956
        %v973 = vadd.f32 %v937, %v957
        %v974 = vadd.f32 %v938, %v958
        %v975 = vadd.f32 %v939, %v959
        %v976 = vadd.f32 %v940, %v960
        %v977 = vadd.f32 %v941, %v961
        %v978 = vadd.f32 %v942, %v962
        %v979 = vadd.f32 %v943, %v963
        %v980 = vadd.f32 %v944, %v964
        %v981 = vadd.f32 %v945, %v965
        %v982 = vadd.f32 %v946, %v966
        %v983 = vadd.f32 %v947, %v967
        %v984 = vadd.f32 %v948, %v968
        %v985 = vadd.f32 %v949, %v969
        %v986 = vadd.f32 %v950, %v970
        %v987 = vadd.f32 %v951, %v971
        %v988 = vlaneseq
        %v989 = vshrl.u32 %v988, 7
        %v990 = vsub.s32 5, %v989
        %v991 = vrot.slane %v256, %v990
        %v992 = vmul.f32 %v896, %v991
        %v993 = vmul.f32 %v897, %v991
        %v994 = vmul.f32 %v898, %v991
        %v995 = vmul.f32 %v899, %v991
        %v996 = vmul.f32 %v900, %v991
        %v997 = vmul.f32 %v901, %v991
        %v998 = vmul.f32 %v902, %v991
        %v999 = vmul.f32 %v903, %v991
        %v1000 = vmul.f32 %v904, %v991
        %v1001 = vmul.f32 %v905, %v991
        %v1002 = vmul.f32 %v906, %v991
        %v1003 = vmul.f32 %v907, %v991
        %v1004 = vmul.f32 %v908, %v991
        %v1005 = vmul.f32 %v909, %v991
        %v1006 = vmul.f32 %v910, %v991
        %v1007 = vmul.f32 %v911, %v991
        %v1008 = vadd.f32 %v972, %v992
        %v1009 = vadd.f32 %v973, %v993
        %v1010 = vadd.f32 %v974, %v994
        %v1011 = vadd.f32 %v975, %v995
        %v1012 = vadd.f32 %v976, %v996
        %v1013 = vadd.f32 %v977, %v997
        %v1014 = vadd.f32 %v978, %v998
        %v1015 = vadd.f32 %v979, %v999
        %v1016 = vadd.f32 %v980, %v1000
        %v1017 = vadd.f32 %v981, %v1001
        %v1018 = vadd.f32 %v982, %v1002
        %v1019 = vadd.f32 %v983, %v1003
        %v1020 = vadd.f32 %v984, %v1004
        %v1021 = vadd.f32 %v985, %v1005
        %v1022 = vadd.f32 %v986, %v1006
        %v1023 = vadd.f32 %v987, %v1007
        %v1024 = vlaneseq
        %v1025 = vshrl.u32 %v1024, 7
        %v1026 = vsub.s32 2, %v1025
        %v1027 = vrot.slane %v257, %v1026
        %v1028 = vmul.f32 %v898, %v1027
        %v1029 = vmul.f32 %v899, %v1027
        %v1030 = vmul.f32 %v900, %v1027
        %v1031 = vmul.f32 %v901, %v1027
        %v1032 = vmul.f32 %v902, %v1027
        %v1033 = vmul.f32 %v903, %v1027
        %v1034 = vmul.f32 %v904, %v1027
        %v1035 = vmul.f32 %v905, %v1027
        %v1036 = vmul.f32 %v906, %v1027
        %v1037 = vmul.f32 %v907, %v1027
        %v1038 = vmul.f32 %v908, %v1027
        %v1039 = vmul.f32 %v909, %v1027
        %v1040 = vmul.f32 %v910, %v1027
        %v1041 = vmul.f32 %v911, %v1027
        %v1042 = vmul.f32 %v912, %v1027
        %v1043 = vmul.f32 %v913, %v1027
        %v1044 = vadd.f32 %v1008, %v1028
        %v1045 = vadd.f32 %v1009, %v1029
        %v1046 = vadd.f32 %v1010, %v1030
        %v1047 = vadd.f32 %v1011, %v1031
        %v1048 = vadd.f32 %v1012, %v1032
        %v1049 = vadd.f32 %v1013, %v1033
        %v1050 = vadd.f32 %v1014, %v1034
        %v1051 = vadd.f32 %v1015, %v1035
        %v1052 = vadd.f32 %v1016, %v1036
        %v1053 = vadd.f32 %v1017, %v1037
        %v1054 = vadd.f32 %v1018, %v1038
        %v1055 = vadd.f32 %v1019, %v1039
        %v1056 = vadd.f32 %v1020, %v1040
        %v1057 = vadd.f32 %v1021, %v1041
        %v1058 = vadd.f32 %v1022, %v1042
        %v1059 = vadd.f32 %v1023, %v1043
        %v1060 = vlaneseq
        %v1061 = vshrl.u32 %v1060, 7
        %v1062 = vsub.s32 7, %v1061
        %v1063 = vrot.slane %v257, %v1062
        %v1064 = vmul.f32 %v900, %v1063
        %v1065 = vmul.f32 %v901, %v1063
        %v1066 = vmul.f32 %v902, %v1063
        %v1067 = vmul.f32 %v903, %v1063
        %v1068 = vmul.f32 %v904, %v1063
        %v1069 = vmul.f32 %v905, %v1063
        %v1070 = vmul.f32 %v906, %v1063
        %v1071 = vmul.f32 %v907, %v1063
        %v1072 = vmul.f32 %v908, %v1063
        %v1073 = vmul.f32 %v909, %v1063
        %v1074 = vmul.f32 %v910, %v1063
        %v1075 = vmul.f32 %v911, %v1063
        %v1076 = vmul.f32 %v912, %v1063
        %v1077 = vmul.f32 %v913, %v1063
        %v1078 = vmul.f32 %v914, %v1063
        %v1079 = vmul.f32 %v915, %v1063
        %v1080 = vadd.f32 %v1044, %v1064
        %v1081 = vadd.f32 %v1045, %v1065
        %v1082 = vadd.f32 %v1046, %v1066
        %v1083 = vadd.f32 %v1047, %v1067
        %v1084 = vadd.f32 %v1048, %v1068
        %v1085 = vadd.f32 %v1049, %v1069
        %v1086 = vadd.f32 %v1050, %v1070
        %v1087 = vadd.f32 %v1051, %v1071
        %v1088 = vadd.f32 %v1052, %v1072
        %v1089 = vadd.f32 %v1053, %v1073
        %v1090 = vadd.f32 %v1054, %v1074
        %v1091 = vadd.f32 %v1055, %v1075
        %v1092 = vadd.f32 %v1056, %v1076
        %v1093 = vadd.f32 %v1057, %v1077
        %v1094 = vadd.f32 %v1058, %v1078
        %v1095 = vadd.f32 %v1059, %v1079
        %v1096 = vld [vmem:[#allocation2 + $0x4] sm:$0xff]
        %v1097 = vld [vmem:[#allocation2 + $0xc] sm:$0xff]
        %v1098 = vld [vmem:[#allocation2 + $0x1c] sm:$0xff]
        %v1099 = vld [vmem:[#allocation2 + $0x24] sm:$0xff]
        %v1100 = vld [vmem:[#allocation2 + $0x34] sm:$0xff]
        %v1101 = vld [vmem:[#allocation2 + $0x3c] sm:$0xff]
        %v1102 = vld [vmem:[#allocation2 + $0x4c] sm:$0xff]
        %v1103 = vld [vmem:[#allocation2 + $0x54] sm:$0xff]
        %v1104 = vld [vmem:[#allocation2 + $0x64] sm:$0xff]
        %v1105 = vld [vmem:[#allocation2 + $0x6c] sm:$0xff]
        %v1106 = vld [vmem:[#allocation2 + $0x7c] sm:$0xff]
        %v1107 = vld [vmem:[#allocation2 + $0x84] sm:$0xff]
        %v1108 = vld [vmem:[#allocation2 + $0x94] sm:$0xff]
        %v1109 = vld [vmem:[#allocation2 + $0x9c] sm:$0xff]
        %v1110 = vld [vmem:[#allocation2 + $0xac] sm:$0xff]
        %v1111 = vld [vmem:[#allocation2 + $0xb4] sm:$0xff]
        %v1112 = vld [vmem:[#allocation2 + $0xc4] sm:$0xff]
        %v1113 = vld [vmem:[#allocation2 + $0xcc] sm:$0xff]
        %v1114 = vld [vmem:[#allocation2 + $0xdc] sm:$0xff]
        %v1115 = vld [vmem:[#allocation2 + $0xe4] sm:$0xff]
        %v1116 = vld [vmem:[#allocation2 + $0xf4] sm:$0xff]
        %v1117 = vld [vmem:[#allocation2 + $0xfc] sm:$0xff]
        %v1118 = vld [vmem:[#allocation2 + $0x10c] sm:$0xff]
        %v1119 = vld [vmem:[#allocation2 + $0x114] sm:$0xff]
        %v1120 = vlaneseq
        %v1121 = vshrl.u32 %v1120, 7
        %v1122 = vsub.s32 4, %v1121
        %v1123 = vrot.slane %v255, %v1122
        %v1124 = vmul.f32 %v1096, %v1123
        %v1125 = vmul.f32 %v1097, %v1123
        %v1126 = vmul.f32 %v1098, %v1123
        %v1127 = vmul.f32 %v1099, %v1123
        %v1128 = vmul.f32 %v1100, %v1123
        %v1129 = vmul.f32 %v1101, %v1123
        %v1130 = vmul.f32 %v1102, %v1123
        %v1131 = vmul.f32 %v1103, %v1123
        %v1132 = vmul.f32 %v1104, %v1123
        %v1133 = vmul.f32 %v1105, %v1123
        %v1134 = vmul.f32 %v1106, %v1123
        %v1135 = vmul.f32 %v1107, %v1123
        %v1136 = vmul.f32 %v1108, %v1123
        %v1137 = vmul.f32 %v1109, %v1123
        %v1138 = vmul.f32 %v1110, %v1123
        %v1139 = vmul.f32 %v1111, %v1123
        %v1140 = vadd.f32 %v1080, %v1124
        %v1141 = vadd.f32 %v1081, %v1125
        %v1142 = vadd.f32 %v1082, %v1126
        %v1143 = vadd.f32 %v1083, %v1127
        %v1144 = vadd.f32 %v1084, %v1128
        %v1145 = vadd.f32 %v1085, %v1129
        %v1146 = vadd.f32 %v1086, %v1130
        %v1147 = vadd.f32 %v1087, %v1131
        %v1148 = vadd.f32 %v1088, %v1132
        %v1149 = vadd.f32 %v1089, %v1133
        %v1150 = vadd.f32 %v1090, %v1134
        %v1151 = vadd.f32 %v1091, %v1135
        %v1152 = vadd.f32 %v1092, %v1136
        %v1153 = vadd.f32 %v1093, %v1137
        %v1154 = vadd.f32 %v1094, %v1138
        %v1155 = vadd.f32 %v1095, %v1139
        %v1156 = vlaneseq
        %v1157 = vshrl.u32 %v1156, 7
        %v1158 = vsub.s32 1, %v1157
        %v1159 = vrot.slane %v256, %v1158
        %v1160 = vmul.f32 %v1098, %v1159
        %v1161 = vmul.f32 %v1099, %v1159
        %v1162 = vmul.f32 %v1100, %v1159
        %v1163 = vmul.f32 %v1101, %v1159
        %v1164 = vmul.f32 %v1102, %v1159
        %v1165 = vmul.f32 %v1103, %v1159
        %v1166 = vmul.f32 %v1104, %v1159
        %v1167 = vmul.f32 %v1105, %v1159
        %v1168 = vmul.f32 %v1106, %v1159
        %v1169 = vmul.f32 %v1107, %v1159
        %v1170 = vmul.f32 %v1108, %v1159
        %v1171 = vmul.f32 %v1109, %v1159
        %v1172 = vmul.f32 %v1110, %v1159
        %v1173 = vmul.f32 %v1111, %v1159
        %v1174 = vmul.f32 %v1112, %v1159
        %v1175 = vmul.f32 %v1113, %v1159
        %v1176 = vadd.f32 %v1140, %v1160
        %v1177 = vadd.f32 %v1141, %v1161
        %v1178 = vadd.f32 %v1142, %v1162
        %v1179 = vadd.f32 %v1143, %v1163
        %v1180 = vadd.f32 %v1144, %v1164
        %v1181 = vadd.f32 %v1145, %v1165
        %v1182 = vadd.f32 %v1146, %v1166
        %v1183 = vadd.f32 %v1147, %v1167
        %v1184 = vadd.f32 %v1148, %v1168
        %v1185 = vadd.f32 %v1149, %v1169
        %v1186 = vadd.f32 %v1150, %v1170
        %v1187 = vadd.f32 %v1151, %v1171
        %v1188 = vadd.f32 %v1152, %v1172
        %v1189 = vadd.f32 %v1153, %v1173
        %v1190 = vadd.f32 %v1154, %v1174
        %v1191 = vadd.f32 %v1155, %v1175
        %v1192 = vlaneseq
        %v1193 = vshrl.u32 %v1192, 7
        %v1194 = vsub.s32 6, %v1193
        %v1195 = vrot.slane %v256, %v1194
        %v1196 = vmul.f32 %v1100, %v1195
        %v1197 = vmul.f32 %v1101, %v1195
        %v1198 = vmul.f32 %v1102, %v1195
        %v1199 = vmul.f32 %v1103, %v1195
        %v1200 = vmul.f32 %v1104, %v1195
        %v1201 = vmul.f32 %v1105, %v1195
        %v1202 = vmul.f32 %v1106, %v1195
        %v1203 = vmul.f32 %v1107, %v1195
        %v1204 = vmul.f32 %v1108, %v1195
        %v1205 = vmul.f32 %v1109, %v1195
        %v1206 = vmul.f32 %v1110, %v1195
        %v1207 = vmul.f32 %v1111, %v1195
        %v1208 = vmul.f32 %v1112, %v1195
        %v1209 = vmul.f32 %v1113, %v1195
        %v1210 = vmul.f32 %v1114, %v1195
        %v1211 = vmul.f32 %v1115, %v1195
        %v1212 = vadd.f32 %v1176, %v1196
        %v1213 = vadd.f32 %v1177, %v1197
        %v1214 = vadd.f32 %v1178, %v1198
        %v1215 = vadd.f32 %v1179, %v1199
        %v1216 = vadd.f32 %v1180, %v1200
        %v1217 = vadd.f32 %v1181, %v1201
        %v1218 = vadd.f32 %v1182, %v1202
        %v1219 = vadd.f32 %v1183, %v1203
        %v1220 = vadd.f32 %v1184, %v1204
        %v1221 = vadd.f32 %v1185, %v1205
        %v1222 = vadd.f32 %v1186, %v1206
        %v1223 = vadd.f32 %v1187, %v1207
        %v1224 = vadd.f32 %v1188, %v1208
        %v1225 = vadd.f32 %v1189, %v1209
        %v1226 = vadd.f32 %v1190, %v1210
        %v1227 = vadd.f32 %v1191, %v1211
        %v1228 = vlaneseq
        %v1229 = vshrl.u32 %v1228, 7
        %v1230 = vsub.s32 3, %v1229
        %v1231 = vrot.slane %v257, %v1230
        %v1232 = vmul.f32 %v1102, %v1231
        %v1233 = vmul.f32 %v1103, %v1231
        %v1234 = vmul.f32 %v1104, %v1231
        %v1235 = vmul.f32 %v1105, %v1231
        %v1236 = vmul.f32 %v1106, %v1231
        %v1237 = vmul.f32 %v1107, %v1231
        %v1238 = vmul.f32 %v1108, %v1231
        %v1239 = vmul.f32 %v1109, %v1231
        %v1240 = vmul.f32 %v1110, %v1231
        %v1241 = vmul.f32 %v1111, %v1231
        %v1242 = vmul.f32 %v1112, %v1231
        %v1243 = vmul.f32 %v1113, %v1231
        %v1244 = vmul.f32 %v1114, %v1231
        %v1245 = vmul.f32 %v1115, %v1231
        %v1246 = vmul.f32 %v1116, %v1231
        %v1247 = vmul.f32 %v1117, %v1231
        %v1248 = vadd.f32 %v1212, %v1232
        %v1249 = vadd.f32 %v1213, %v1233
        %v1250 = vadd.f32 %v1214, %v1234
        %v1251 = vadd.f32 %v1215, %v1235
        %v1252 = vadd.f32 %v1216, %v1236
        %v1253 = vadd.f32 %v1217, %v1237
        %v1254 = vadd.f32 %v1218, %v1238
        %v1255 = vadd.f32 %v1219, %v1239
        %v1256 = vadd.f32 %v1220, %v1240
        %v1257 = vadd.f32 %v1221, %v1241
        %v1258 = vadd.f32 %v1222, %v1242
        %v1259 = vadd.f32 %v1223, %v1243
        %v1260 = vadd.f32 %v1224, %v1244
        %v1261 = vadd.f32 %v1225, %v1245
        %v1262 = vadd.f32 %v1226, %v1246
        %v1263 = vadd.f32 %v1227, %v1247
        %v1264 = vlaneseq
        %v1265 = vshrl.u32 %v1264, 7
        %v1266 = vsub.s32 0, %v1265
        %v1267 = vrot.slane %v258, %v1266
        %v1268 = vmul.f32 %v1104, %v1267
        %v1269 = vmul.f32 %v1105, %v1267
        %v1270 = vmul.f32 %v1106, %v1267
        %v1271 = vmul.f32 %v1107, %v1267
        %v1272 = vmul.f32 %v1108, %v1267
        %v1273 = vmul.f32 %v1109, %v1267
        %v1274 = vmul.f32 %v1110, %v1267
        %v1275 = vmul.f32 %v1111, %v1267
        %v1276 = vmul.f32 %v1112, %v1267
        %v1277 = vmul.f32 %v1113, %v1267
        %v1278 = vmul.f32 %v1114, %v1267
        %v1279 = vmul.f32 %v1115, %v1267
        %v1280 = vmul.f32 %v1116, %v1267
        %v1281 = vmul.f32 %v1117, %v1267
        %v1282 = vmul.f32 %v1118, %v1267
        %v1283 = vmul.f32 %v1119, %v1267
        %v1284 = vadd.f32 %v1248, %v1268
        %v1285 = vadd.f32 %v1249, %v1269
        %v1286 = vadd.f32 %v1250, %v1270
        %v1287 = vadd.f32 %v1251, %v1271
        %v1288 = vadd.f32 %v1252, %v1272
        %v1289 = vadd.f32 %v1253, %v1273
        %v1290 = vadd.f32 %v1254, %v1274
        %v1291 = vadd.f32 %v1255, %v1275
        %v1292 = vadd.f32 %v1256, %v1276
        %v1293 = vadd.f32 %v1257, %v1277
        %v1294 = vadd.f32 %v1258, %v1278
        %v1295 = vadd.f32 %v1259, %v1279
        %v1296 = vadd.f32 %v1260, %v1280
        %v1297 = vadd.f32 %v1261, %v1281
        %v1298 = vadd.f32 %v1262, %v1282
        %v1299 = vadd.f32 %v1263, %v1283
        %v1301 = vlaneseq
        %v1302 = vshrl.u32 %v1301, 7
        %v1303 = vsub.s32 0, %v1302
        %v1304 = vrot.slane %v259, %v1303
        %v1306 = vadd.f32 %v1284, %v1304
        %v1307 = vadd.f32 %v1285, %v1304
        %v1308 = vadd.f32 %v1286, %v1304
        %v1309 = vadd.f32 %v1287, %v1304
        %v1310 = vadd.f32 %v1288, %v1304
        %v1311 = vadd.f32 %v1289, %v1304
        %v1312 = vadd.f32 %v1290, %v1304
        %v1313 = vadd.f32 %v1291, %v1304
        %v1314 = vadd.f32 %v1292, %v1304
        %v1315 = vadd.f32 %v1293, %v1304
        %v1316 = vadd.f32 %v1294, %v1304
        %v1317 = vadd.f32 %v1295, %v1304
        %v1318 = vadd.f32 %v1296, %v1304
        %v1319 = vadd.f32 %v1297, %v1304
        %v1320 = vadd.f32 %v1298, %v1304
        %v1321 = vadd.f32 %v1299, %v1304
        %v1322 = vmul.f32 %v1306, 0.5
        %v1323 = vmul.f32 %v1307, 0.5
        %v1324 = vmul.f32 %v1308, 0.5
        %v1325 = vmul.f32 %v1309, 0.5
        %v1326 = vmul.f32 %v1310, 0.5
        %v1327 = vmul.f32 %v1311, 0.5
        %v1328 = vmul.f32 %v1312, 0.5
        %v1329 = vmul.f32 %v1313, 0.5
        %v1330 = vmul.f32 %v1314, 0.5
        %v1331 = vmul.f32 %v1315, 0.5
        %v1332 = vmul.f32 %v1316, 0.5
        %v1333 = vmul.f32 %v1317, 0.5
        %v1334 = vmul.f32 %v1318, 0.5
        %v1335 = vmul.f32 %v1319, 0.5
        %v1336 = vmul.f32 %v1320, 0.5
        %v1337 = vmul.f32 %v1321, 0.5
        %v1338 = vmul.f32 %v1306, 0.70710677
        %v1339 = vmul.f32 %v1307, 0.70710677
        %v1340 = vmul.f32 %v1308, 0.70710677
        %v1341 = vmul.f32 %v1309, 0.70710677
        %v1342 = vmul.f32 %v1310, 0.70710677
        %v1343 = vmul.f32 %v1311, 0.70710677
        %v1344 = vmul.f32 %v1312, 0.70710677
        %v1345 = vmul.f32 %v1313, 0.70710677
        %v1346 = vmul.f32 %v1314, 0.70710677
        %v1347 = vmul.f32 %v1315, 0.70710677
        %v1348 = vmul.f32 %v1316, 0.70710677
        %v1349 = vmul.f32 %v1317, 0.70710677
        %v1350 = vmul.f32 %v1318, 0.70710677
        %v1351 = vmul.f32 %v1319, 0.70710677
        %v1352 = vmul.f32 %v1320, 0.70710677
        %v1353 = vmul.f32 %v1321, 0.70710677
        %v1354 = verf.f32.pop %v1338
        %v1355 = verf.f32.pop %v1339
        %v1356 = verf.f32.pop %v1340
        %v1357 = verf.f32.pop %v1341
        %v1358 = verf.f32.pop %v1342
        %v1359 = verf.f32.pop %v1343
        %v1360 = verf.f32.pop %v1344
        %v1361 = verf.f32.pop %v1345
        %v1362 = verf.f32.pop %v1346
        %v1363 = verf.f32.pop %v1347
        %v1364 = verf.f32.pop %v1348
        %v1365 = verf.f32.pop %v1349
        %v1366 = verf.f32.pop %v1350
        %v1367 = verf.f32.pop %v1351
        %v1368 = verf.f32.pop %v1352
        %v1369 = verf.f32.pop %v1353
        %v1370 = vadd.f32 %v1354, 1.0
        %v1371 = vadd.f32 %v1355, 1.0
        %v1372 = vadd.f32 %v1356, 1.0
        %v1373 = vadd.f32 %v1357, 1.0
        %v1374 = vadd.f32 %v1358, 1.0
        %v1375 = vadd.f32 %v1359, 1.0
        %v1376 = vadd.f32 %v1360, 1.0
        %v1377 = vadd.f32 %v1361, 1.0
        %v1378 = vadd.f32 %v1362, 1.0
        %v1379 = vadd.f32 %v1363, 1.0
        %v1380 = vadd.f32 %v1364, 1.0
        %v1381 = vadd.f32 %v1365, 1.0
        %v1382 = vadd.f32 %v1366, 1.0
        %v1383 = vadd.f32 %v1367, 1.0
        %v1384 = vadd.f32 %v1368, 1.0
        %v1385 = vadd.f32 %v1369, 1.0
        %v1386 = vmul.f32 %v1322, %v1370
        %v1387 = vmul.f32 %v1323, %v1371
        %v1388 = vmul.f32 %v1324, %v1372
        %v1389 = vmul.f32 %v1325, %v1373
        %v1390 = vmul.f32 %v1326, %v1374
        %v1391 = vmul.f32 %v1327, %v1375
        %v1392 = vmul.f32 %v1328, %v1376
        %v1393 = vmul.f32 %v1329, %v1377
        %v1394 = vmul.f32 %v1330, %v1378
        %v1395 = vmul.f32 %v1331, %v1379
        %v1396 = vmul.f32 %v1332, %v1380
        %v1397 = vmul.f32 %v1333, %v1381
        %v1398 = vmul.f32 %v1334, %v1382
        %v1399 = vmul.f32 %v1335, %v1383
        %v1400 = vmul.f32 %v1336, %v1384
        %v1401 = vmul.f32 %v1337, %v1385
        %s1402 = scalar_lea.vmem [#allocation2], 48
        %v1403 = vld [vmem:[%s1402 + $0x2] sm:$0xff]
        %v1404 = vld [vmem:[%s1402 + $0xa] sm:$0xff]
        %v1405 = vld [vmem:[%s1402 + $0x1a] sm:$0xff]
        %v1406 = vld [vmem:[%s1402 + $0x22] sm:$0xff]
        %v1407 = vld [vmem:[%s1402 + $0x32] sm:$0xff]
        %v1408 = vld [vmem:[%s1402 + $0x3a] sm:$0xff]
        %v1409 = vld [vmem:[%s1402 + $0x4a] sm:$0xff]
        %v1410 = vld [vmem:[%s1402 + $0x52] sm:$0xff]
        %v1411 = vld [vmem:[%s1402 + $0x62] sm:$0xff]
        %v1412 = vld [vmem:[%s1402 + $0x6a] sm:$0xff]
        %v1413 = vld [vmem:[%s1402 + $0x7a] sm:$0xff]
        %v1414 = vld [vmem:[%s1402 + $0x82] sm:$0xff]
        %v1415 = vld [vmem:[%s1402 + $0x92] sm:$0xff]
        %v1416 = vld [vmem:[%s1402 + $0x9a] sm:$0xff]
        %v1417 = vld [vmem:[%s1402 + $0xaa] sm:$0xff]
        %v1418 = vld [vmem:[%s1402 + $0xb2] sm:$0xff]
        %v1419 = vadd.f32 %v1386, %v1403
        %v1420 = vadd.f32 %v1387, %v1404
        %v1421 = vadd.f32 %v1388, %v1405
        %v1422 = vadd.f32 %v1389, %v1406
        %v1423 = vadd.f32 %v1390, %v1407
        %v1424 = vadd.f32 %v1391, %v1408
        %v1425 = vadd.f32 %v1392, %v1409
        %v1426 = vadd.f32 %v1393, %v1410
        %v1427 = vadd.f32 %v1394, %v1411
        %v1428 = vadd.f32 %v1395, %v1412
        %v1429 = vadd.f32 %v1396, %v1413
        %v1430 = vadd.f32 %v1397, %v1414
        %v1431 = vadd.f32 %v1398, %v1415
        %v1432 = vadd.f32 %v1399, %v1416
        %v1433 = vadd.f32 %v1400, %v1417
        %v1434 = vadd.f32 %v1401, %v1418
        %1435 = vst [vmem:[%s162] sm:$0xff] %v1419
        %1436 = vst [vmem:[%s162 + $0x8] sm:$0xff] %v1420
        %1437 = vst [vmem:[%s162 + $0x10] sm:$0xff] %v1421
        %1438 = vst [vmem:[%s162 + $0x18] sm:$0xff] %v1422
        %1439 = vst [vmem:[%s162 + $0x20] sm:$0xff] %v1423
        %1440 = vst [vmem:[%s162 + $0x28] sm:$0xff] %v1424
        %1441 = vst [vmem:[%s162 + $0x30] sm:$0xff] %v1425
        %1442 = vst [vmem:[%s162 + $0x38] sm:$0xff] %v1426
        %1443 = vst [vmem:[%s162 + $0x40] sm:$0xff] %v1427
        %1444 = vst [vmem:[%s162 + $0x48] sm:$0xff] %v1428
        %1445 = vst [vmem:[%s162 + $0x50] sm:$0xff] %v1429
        %1446 = vst [vmem:[%s162 + $0x58] sm:$0xff] %v1430
        %1447 = vst [vmem:[%s162 + $0x60] sm:$0xff] %v1431
        %1448 = vst [vmem:[%s162 + $0x68] sm:$0xff] %v1432
        %1449 = vst [vmem:[%s162 + $0x70] sm:$0xff] %v1433
        %1450 = vst [vmem:[%s162 + $0x78] sm:$0xff] %v1434
        %s1451 = sand.u32 %s91, 1
        %s1452 = scalar_lea.sflag [#allocation5], %s1451
        %s1453 = sand.u32 %s91, 1
        %s1454 = smul.addr %s1453, 128
        %s1455 = scalar_lea.vmem [#allocation4], %s1454
        // Predicated region
        $region53: #{tpu_custom_call.1} parent=27 // pred_check
          %p1456 = pneg %p101
        $region54: #{tpu_custom_call.1} parent=27 // pred_check_branch
          %1458 = sbr.rel (%p1456) target = $region56
        $region55: #{tpu_custom_call.1} parent=27 // pred_region
          %s1459 = smul.u32 8, %s22
          %s1461 = ssub.s32 2048, 2048
          %1462 = vsyncadd %s1452, %s1461
          %s1463 = smul.addr %s1459, 2
          %s1464 = smul.addr %s21, 32
          %s1465 = sadd.s32 %s1463, %s1464
          %s1466 = smul.addr %s1465, 128
          %s1467 = scalar_lea.hbm %s3, %s1466
          %s1468 = sshll.u32 %s1455, 4
          %s1469 = int_to_ptr.vmem [resolvable:$true] %s1468
          %1474 = dma.vmem_to_hbm [thread:$0]  %s1469, 2048, %s1467, %s1452, 128, 128, 8
        $region56: #{tpu_custom_call.1} parent=27 // pred_fallthru
          _
      $region28: #{tpu_custom_call.1} parent=5 // pred_fallthru
        _
      %p1475 = scmp.le.s32.totalorder 2, %s12
      // Predicated region
      $region57: #{tpu_custom_call.1} parent=5 // pred_check
        %p1476 = pneg %p1475
      $region58: #{tpu_custom_call.1} parent=5 // pred_check_branch
        %1478 = sbr.rel (%p1476) target = $region60
      $region59: #{tpu_custom_call.1} parent=5 // pred_region
        %s1479 = ssub.s32 %s12, 2
        // Predicated region
        $region61: #{tpu_custom_call.1} parent=59 // pred_check
          %p1480 = pneg %p107
        $region62: #{tpu_custom_call.1} parent=59 // pred_check_branch
          %1482 = sbr.rel (%p1480) target = $region64
        $region63: #{tpu_custom_call.1} parent=59 // pred_region
          %s1483 = sand.u32 %s92, 1
          %s1484 = scalar_lea.sflag [#allocation5], %s1483
          %s1485 = sand.u32 %s92, 1
          %s1486 = smul.addr %s1485, 128
          %s1487 = scalar_lea.vmem [#allocation4], %s1486
          %1488 = dma.done %s1484, 2048
        $region64: #{tpu_custom_call.1} parent=59 // pred_fallthru
          _
      $region60: #{tpu_custom_call.1} parent=5 // pred_fallthru
        _
    $region6: #{tpu_custom_call.1} parent=1 // loop_footer
      %s16 = sadd.s32 1, %s12
    $region7: #{tpu_custom_call.1} parent=1 // loop_footer_branch
      %11 = sbr.rel target = $region3
    $region8: #{tpu_custom_call.1} parent=1 // loop_exit
      _
    %1489 = vsyncpa [#allocation5], 1
    %s1490 = scalar_lea.sflag [#allocation5], 1
    %1491 = vsyncpa %s1490, 1
  %1492 = vsyncmov [#allocation3]
  %s1493 = vpop.sfrf %1492
  %p1494 = scmp.eq.s32.totalorder %s1493, 0
  %p1495 = pneg %p1494
  %1497 = shalt.err (%p1495)

</llo_original>
